<compile_context>
chip_gen: v7x
topology: tpu7x:2x2x1
jax: 0.10.0
libtpu: 0.0.40
codegen_flags: <defaults>
</compile_context>

<pallas_src>
import functools
import math

import jax
import jax.numpy as jnp
from jax.experimental import pallas as pl
from jax.experimental.pallas import tpu as pltpu

_LANE = 128


def _round_up(v, m):
    return ((v + m - 1) // m) * m


def _make_kernel(num_hidden, out_c, slab_w):
    """Fused MLP kernel for a fixed number of hidden layers."""

    def kernel(*refs):
        idx = 0
        x_ref = refs[idx]; idx += 1
        # Cast the f32 input tile to bf16 in VMEM (no extra wrapper-side pass).
        h = x_ref[...].astype(jnp.bfloat16)

        for _ in range(num_hidden):
            w_ref, s_ref, t_ref = refs[idx:idx + 3]
            idx += 3
            # Linear (bias folded into t) + eval BatchNorm folded to scale/shift.
            h = jnp.dot(h, w_ref[...], preferred_element_type=jnp.float32)
            h = h * s_ref[...] + t_ref[...]
            h = jnp.maximum(h, 0.0).astype(jnp.bfloat16)
            # TODO(synk): F.dropout skipped (identity in eval mode).

        wh_ref, bh_ref, wc2_ref, bc2_ref = refs[idx:idx + 4]
        out_ref = refs[idx + 4]

        # Fused heads: one (hid, slab_w + hid) matmul covering the final Linear
        # (lane-padded to slab_w, padded cols are exactly 0) and conf_layer1.
        z = jnp.dot(h, wh_ref[...], preferred_element_type=jnp.float32) + bh_ref[...]
        x_final = z[:, :slab_w]
        c = jnp.maximum(z[:, slab_w:], 0.0).astype(jnp.bfloat16)

        # conf_layer2 (real column placed at lane `out_c`) -> sigmoid on EUP.
        c2 = jnp.dot(c, wc2_ref[...], preferred_element_type=jnp.float32) + bc2_ref[...]
        conf = pl.reciprocal(1.0 + jnp.exp(-c2), approx=True)

        # Single lane-dense store: cols [0, out_c) = x_final, col out_c = conf.
        col = jax.lax.broadcasted_iota(jnp.int32, conf.shape, 1)
        out_ref[...] = jnp.where(col == out_c, conf, x_final).astype(out_ref.dtype)

    return kernel


@functools.partial(jax.jit, static_argnames=("tile_n", "no_batch_norm"))
def mlp_learn_forward(x, params, *, tile_n=1024, no_batch_norm=False):
    """x: (N, in_channels) f32. params: dict of PyTorch-layout f32 arrays.
    Returns (x_final (N, out_channels) f32, conf (N, 1) f32)."""
    lins_w, lins_b = params["lins_w"], params["lins_b"]
    num_layers = len(lins_w)
    num_hidden = num_layers - 1
    N, in_c = x.shape
    hid = lins_w[0].shape[0]
    out_c = lins_w[-1].shape[0]
    eps = 1e-5

    slab_w = _round_up(out_c + 1, _LANE)   # merged lane-dense output width

    # Row tiling: 16-row aligned (bf16 sublane packing), capped at ceil(N/2) so
    # small-N calls still yield >= 2 grid steps (v7x megacore); zero-pad N.
    tile = min(tile_n, _round_up(max((N + 1) // 2, 8), 16))
    n_rows = _round_up(N, tile)
    if n_rows != N:
        x = jnp.pad(x, ((0, n_rows - N), (0, 0)))

    def const_spec(arr):
        # Grid-invariant block (weights / biases / BN scale-shift).
        # TODO(synk): for very large `hid` on v7x (64 MiB VMEM), single-buffer
        # these via pipeline_mode=pl.Buffered(1); irrelevant at hid=128.
        return pl.BlockSpec(arr.shape, lambda i: (0, 0))

    inputs = [x]
    in_specs = [pl.BlockSpec((tile, in_c), lambda i: (i, 0))]

    for l in range(num_hidden):
        w = lins_w[l].T.astype(jnp.bfloat16)                    # (d_in, hid)
        b = lins_b[l].astype(jnp.float32)
        if no_batch_norm:
            s = jnp.ones((hid,), jnp.float32)
            t = b
        else:
            inv = jax.lax.rsqrt(params["bn_var"][l] + eps)
            s = params["bn_gamma"][l] * inv
            t = s * (b - params["bn_mean"][l]) + params["bn_beta"][l]
        s = s.reshape(1, hid).astype(jnp.float32)
        t = t.reshape(1, hid).astype(jnp.float32)
        for a in (w, s, t):
            inputs.append(a)
            in_specs.append(const_spec(a))

    # Fused heads weight: [final Linear padded to slab_w | conf_layer1].
    w_out = jnp.zeros((hid, slab_w), jnp.float32).at[:, :out_c].set(lins_w[-1].T)
    b_out = jnp.zeros((1, slab_w), jnp.float32).at[:, :out_c].set(lins_b[-1])
    wc1 = params["conf1_w"].T.astype(jnp.float32)
    bc1 = params["conf1_b"].reshape(1, hid).astype(jnp.float32)
    w_heads = jnp.concatenate([w_out, wc1], axis=1).astype(jnp.bfloat16)
    b_heads = jnp.concatenate([b_out, bc1], axis=1)
    # conf_layer2 placed at lane `out_c` of a slab_w-wide block.
    wc2 = (jnp.zeros((hid, slab_w), jnp.float32)
           .at[:, out_c:out_c + 1].set(params["conf2_w"].T)).astype(jnp.bfloat16)
    bc2 = jnp.zeros((1, slab_w), jnp.float32).at[:, out_c].set(
        params["conf2_b"].reshape(())[()])
    for a in (w_heads, b_heads, wc2, bc2):
        inputs.append(a)
        in_specs.append(const_spec(a))

    grid = (n_rows // tile,)
    out_shape = jax.ShapeDtypeStruct((n_rows, slab_w), jnp.float32)
    out_specs = pl.BlockSpec((tile, slab_w), lambda i: (i, 0))

    flops = 2 * n_rows * (in_c * hid + (num_hidden - 1) * hid * hid
                          + hid * (slab_w + hid) + hid * slab_w)
    bytes_accessed = (sum(int(a.size) * a.dtype.itemsize for a in inputs)
                      + n_rows * slab_w * 4)

    slab = pl.pallas_call(
        _make_kernel(num_hidden, out_c, slab_w),
        out_shape=out_shape,
        grid=grid,
        in_specs=in_specs,
        out_specs=out_specs,
        compiler_params=pltpu.CompilerParams(
            dimension_semantics=("parallel",),
            vmem_limit_bytes=32 * 1024 * 1024,
        ),
        cost_estimate=pl.CostEstimate(
            flops=flops,
            transcendentals=n_rows * slab_w,
            bytes_accessed=bytes_accessed,
        ),
    )(*inputs)

    return slab[:N, :out_c], slab[:N, out_c:out_c + 1]


def init_params(key, in_c, hid, out_c, num_layers):
    """Deterministic params mirroring PyTorch layouts/init. BN running stats are
    randomized (instead of the fresh-module 0/1 defaults) so the eval-mode
    BatchNorm path is actually exercised."""
    n_keys = 2 * num_layers + 4 * (num_layers - 1) + 4
    keys = iter(jax.random.split(key, n_keys))

    def linear(kw, kb, fan_in, fan_out):
        bound = 1.0 / math.sqrt(fan_in)
        w = jax.random.uniform(kw, (fan_out, fan_in), jnp.float32, -bound, bound)
        b = jax.random.uniform(kb, (fan_out,), jnp.float32, -bound, bound)
        return w, b

    dims = [in_c] + [hid] * (num_layers - 1) + [out_c]
    lins_w, lins_b = [], []
    for l in range(num_layers):
        w, b = linear(next(keys), next(keys), dims[l], dims[l + 1])
        lins_w.append(w)
        lins_b.append(b)

    bn_gamma, bn_beta, bn_mean, bn_var = [], [], [], []
    for _ in range(num_layers - 1):
        bn_gamma.append(jax.random.uniform(next(keys), (hid,), jnp.float32, 0.5, 1.5))
        bn_beta.append(0.1 * jax.random.normal(next(keys), (hid,), jnp.float32))
        bn_mean.append(0.1 * jax.random.normal(next(keys), (hid,), jnp.float32))
        bn_var.append(jax.random.uniform(next(keys), (hid,), jnp.float32, 0.5, 1.5))

    c1w, c1b = linear(next(keys), next(keys), hid, hid)
    c2w, c2b = linear(next(keys), next(keys), hid, 1)
    return {
        "lins_w": tuple(lins_w), "lins_b": tuple(lins_b),
        "bn_gamma": tuple(bn_gamma), "bn_beta": tuple(bn_beta),
        "bn_mean": tuple(bn_mean), "bn_var": tuple(bn_var),
        "conf1_w": c1w, "conf1_b": c1b, "conf2_w": c2w, "conf2_b": c2b,
    }


def reference_forward(x, params, *, no_batch_norm=False):
    """Pure-JAX reference mirroring the kernel's bf16/f32 mixed precision."""
    eps = 1e-5
    num_hidden = len(params["lins_w"]) - 1
    h = x.astype(jnp.bfloat16)
    for l in range(num_hidden):
        w = params["lins_w"][l].T.astype(jnp.bfloat16)
        h = jnp.dot(h, w, preferred_element_type=jnp.float32) + params["lins_b"][l]
        if not no_batch_norm:
            inv = jax.lax.rsqrt(params["bn_var"][l] + eps)
            g = params["bn_gamma"][l]
            h = h * (g * inv) + (params["bn_beta"][l] - params["bn_mean"][l] * g * inv)
        h = jnp.maximum(h, 0.0).astype(jnp.bfloat16)
    x_final = (jnp.dot(h, params["lins_w"][-1].T.astype(jnp.bfloat16),
                       preferred_element_type=jnp.float32) + params["lins_b"][-1])
    c = (jnp.dot(h, params["conf1_w"].T.astype(jnp.bfloat16),
                 preferred_element_type=jnp.float32) + params["conf1_b"])
    c = jnp.maximum(c, 0.0).astype(jnp.bfloat16)
    c = (jnp.dot(c, params["conf2_w"].T.astype(jnp.bfloat16),
                 preferred_element_type=jnp.float32)
         + params["conf2_b"].reshape(1, 1))
    conf = 1.0 / (1.0 + jnp.exp(-c))
    return x_final, conf


if __name__ == "__main__":
    key = jax.random.PRNGKey(0)
    # Small but lane-aligned config: num_layers=3 MLP, args.no_batch_norm=False.
    N, in_c, hid, out_c, num_layers = 500, 128, 128, 10, 3

    kx, kp = jax.random.split(key)
    x = jax.random.normal(kx, (N, in_c), jnp.float32)
    params = init_params(kp, in_c, hid, out_c, num_layers)

    x_final, conf = mlp_learn_forward(x, params, tile_n=1024, no_batch_norm=False)
    x_final, conf = jax.block_until_ready((x_final, conf))

    ref_final, ref_conf = reference_forward(x, params, no_batch_norm=False)
    assert x_final.shape == (N, out_c)
    assert conf.shape == (N, 1)
    assert jnp.allclose(x_final, ref_final, atol=2e-2, rtol=2e-2), "x_final mismatch"
    assert jnp.allclose(conf, ref_conf, atol=2e-2, rtol=2e-2), "conf mismatch"

    print("KERNEL_OK")
</pallas_src>

<mosaic_0001>
module attributes {stable_mosaic.version = 11 : i64} {
  func.func @kernel(%arg0: i32, %arg1: memref<256x128xf32, #tpu.memory_space<vmem>>, %arg2: memref<128x128xbf16, #tpu.memory_space<vmem>>, %arg3: memref<1x128xf32, #tpu.memory_space<vmem>>, %arg4: memref<1x128xf32, #tpu.memory_space<vmem>>, %arg5: memref<128x128xbf16, #tpu.memory_space<vmem>>, %arg6: memref<1x128xf32, #tpu.memory_space<vmem>>, %arg7: memref<1x128xf32, #tpu.memory_space<vmem>>, %arg8: memref<128x256xbf16, #tpu.memory_space<vmem>>, %arg9: memref<1x256xf32, #tpu.memory_space<vmem>>, %arg10: memref<128x128xbf16, #tpu.memory_space<vmem>>, %arg11: memref<1x128xf32, #tpu.memory_space<vmem>>, %arg12: memref<256x128xf32, #tpu.memory_space<vmem>>) attributes {dimension_semantics = [#tpu.dimension_semantics<parallel>], iteration_bounds = array<i64: 2>, scalar_prefetch = 0 : i64, scratch_operands = 0 : i64, tpu.core_type = #tpu.core_type<tc>, window_params = [{transform_indices = @transform_0, window_bounds = array<i64: 256, 128>}, {pipeline_mode = #tpu.pipeline_mode<synchronous>, transform_indices = @transform_1, window_bounds = array<i64: 128, 128>}, {pipeline_mode = #tpu.pipeline_mode<synchronous>, transform_indices = @transform_2, window_bounds = array<i64: 1, 128>}, {pipeline_mode = #tpu.pipeline_mode<synchronous>, transform_indices = @transform_3, window_bounds = array<i64: 1, 128>}, {pipeline_mode = #tpu.pipeline_mode<synchronous>, transform_indices = @transform_4, window_bounds = array<i64: 128, 128>}, {pipeline_mode = #tpu.pipeline_mode<synchronous>, transform_indices = @transform_5, window_bounds = array<i64: 1, 128>}, {pipeline_mode = #tpu.pipeline_mode<synchronous>, transform_indices = @transform_6, window_bounds = array<i64: 1, 128>}, {pipeline_mode = #tpu.pipeline_mode<synchronous>, transform_indices = @transform_7, window_bounds = array<i64: 128, 256>}, {pipeline_mode = #tpu.pipeline_mode<synchronous>, transform_indices = @transform_8, window_bounds = array<i64: 1, 256>}, {pipeline_mode = #tpu.pipeline_mode<synchronous>, transform_indices = @transform_9, window_bounds = array<i64: 128, 128>}, {pipeline_mode = #tpu.pipeline_mode<synchronous>, transform_indices = @transform_10, window_bounds = array<i64: 1, 128>}, {transform_indices = @transform_11, window_bounds = array<i64: 256, 128>}]} {
    %c0 = arith.constant 0 : index
    %c0_0 = arith.constant 0 : index
    %0 = vector.load %arg1[%c0, %c0_0] : memref<256x128xf32, #tpu.memory_space<vmem>>, vector<256x128xf32>
    %1 = arith.truncf %0 : vector<256x128xf32> to vector<256x128xbf16>
    %c0_1 = arith.constant 0 : index
    %c0_2 = arith.constant 0 : index
    %2 = vector.load %arg2[%c0_1, %c0_2] : memref<128x128xbf16, #tpu.memory_space<vmem>>, vector<128x128xbf16>
    %cst = arith.constant dense<0.000000e+00> : vector<256x128xf32>
    %3 = tpu.matmul %1, %2, %cst {dimension_numbers = #tpu.dot_dimension_numbers<[1], [0], [0], [1], [0, 0, 1, 1], [], []>} : vector<256x128xbf16>, vector<128x128xbf16>, vector<256x128xf32> -> vector<256x128xf32>
    %c0_3 = arith.constant 0 : index
    %c0_4 = arith.constant 0 : index
    %4 = vector.load %arg3[%c0_3, %c0_4] : memref<1x128xf32, #tpu.memory_space<vmem>>, vector<1x128xf32>
    %5 = vector.broadcast %4 : vector<1x128xf32> to vector<256x128xf32>
    %6 = arith.mulf %3, %5 : vector<256x128xf32>
    %c0_5 = arith.constant 0 : index
    %c0_6 = arith.constant 0 : index
    %7 = vector.load %arg4[%c0_5, %c0_6] : memref<1x128xf32, #tpu.memory_space<vmem>>, vector<1x128xf32>
    %8 = vector.broadcast %7 : vector<1x128xf32> to vector<256x128xf32>
    %9 = arith.addf %6, %8 : vector<256x128xf32>
    %cst_7 = arith.constant 0.000000e+00 : f32
    %10 = vector.broadcast %cst_7 : f32 to vector<256x128xf32>
    %11 = arith.maximumf %9, %10 : vector<256x128xf32>
    %12 = arith.truncf %11 : vector<256x128xf32> to vector<256x128xbf16>
    %c0_8 = arith.constant 0 : index
    %c0_9 = arith.constant 0 : index
    %13 = vector.load %arg5[%c0_8, %c0_9] : memref<128x128xbf16, #tpu.memory_space<vmem>>, vector<128x128xbf16>
    %cst_10 = arith.constant dense<0.000000e+00> : vector<256x128xf32>
    %14 = tpu.matmul %12, %13, %cst_10 {dimension_numbers = #tpu.dot_dimension_numbers<[1], [0], [0], [1], [0, 0, 1, 1], [], []>} : vector<256x128xbf16>, vector<128x128xbf16>, vector<256x128xf32> -> vector<256x128xf32>
    %c0_11 = arith.constant 0 : index
    %c0_12 = arith.constant 0 : index
    %15 = vector.load %arg6[%c0_11, %c0_12] : memref<1x128xf32, #tpu.memory_space<vmem>>, vector<1x128xf32>
    %16 = vector.broadcast %15 : vector<1x128xf32> to vector<256x128xf32>
    %17 = arith.mulf %14, %16 : vector<256x128xf32>
    %c0_13 = arith.constant 0 : index
    %c0_14 = arith.constant 0 : index
    %18 = vector.load %arg7[%c0_13, %c0_14] : memref<1x128xf32, #tpu.memory_space<vmem>>, vector<1x128xf32>
    %19 = vector.broadcast %18 : vector<1x128xf32> to vector<256x128xf32>
    %20 = arith.addf %17, %19 : vector<256x128xf32>
    %cst_15 = arith.constant 0.000000e+00 : f32
    %21 = vector.broadcast %cst_15 : f32 to vector<256x128xf32>
    %22 = arith.maximumf %20, %21 : vector<256x128xf32>
    %23 = arith.truncf %22 : vector<256x128xf32> to vector<256x128xbf16>
    %c0_16 = arith.constant 0 : index
    %c0_17 = arith.constant 0 : index
    %24 = vector.load %arg8[%c0_16, %c0_17] : memref<128x256xbf16, #tpu.memory_space<vmem>>, vector<128x256xbf16>
    %cst_18 = arith.constant dense<0.000000e+00> : vector<256x256xf32>
    %25 = tpu.matmul %23, %24, %cst_18 {dimension_numbers = #tpu.dot_dimension_numbers<[1], [0], [0], [1], [0, 0, 1, 1], [], []>} : vector<256x128xbf16>, vector<128x256xbf16>, vector<256x256xf32> -> vector<256x256xf32>
    %c0_19 = arith.constant 0 : index
    %c0_20 = arith.constant 0 : index
    %26 = vector.load %arg9[%c0_19, %c0_20] : memref<1x256xf32, #tpu.memory_space<vmem>>, vector<1x256xf32>
    %27 = vector.broadcast %26 : vector<1x256xf32> to vector<256x256xf32>
    %28 = arith.addf %25, %27 : vector<256x256xf32>
    %29 = vector.extract_strided_slice %28 {offsets = [0, 0], sizes = [256, 128], strides = [1, 1]} : vector<256x256xf32> to vector<256x128xf32>
    %30 = vector.extract_strided_slice %28 {offsets = [0, 128], sizes = [256, 128], strides = [1, 1]} : vector<256x256xf32> to vector<256x128xf32>
    %cst_21 = arith.constant 0.000000e+00 : f32
    %31 = vector.broadcast %cst_21 : f32 to vector<256x128xf32>
    %32 = arith.maximumf %30, %31 : vector<256x128xf32>
    %33 = arith.truncf %32 : vector<256x128xf32> to vector<256x128xbf16>
    %c0_22 = arith.constant 0 : index
    %c0_23 = arith.constant 0 : index
    %34 = vector.load %arg10[%c0_22, %c0_23] : memref<128x128xbf16, #tpu.memory_space<vmem>>, vector<128x128xbf16>
    %cst_24 = arith.constant dense<0.000000e+00> : vector<256x128xf32>
    %35 = tpu.matmul %33, %34, %cst_24 {dimension_numbers = #tpu.dot_dimension_numbers<[1], [0], [0], [1], [0, 0, 1, 1], [], []>} : vector<256x128xbf16>, vector<128x128xbf16>, vector<256x128xf32> -> vector<256x128xf32>
    %c0_25 = arith.constant 0 : index
    %c0_26 = arith.constant 0 : index
    %36 = vector.load %arg11[%c0_25, %c0_26] : memref<1x128xf32, #tpu.memory_space<vmem>>, vector<1x128xf32>
    %37 = vector.broadcast %36 : vector<1x128xf32> to vector<256x128xf32>
    %38 = arith.addf %35, %37 : vector<256x128xf32>
    %cst_27 = arith.constant 0.000000e+00 : f32
    %39 = vector.broadcast %cst_27 : f32 to vector<256x128xf32>
    %40 = arith.subf %39, %38 : vector<256x128xf32>
    %41 = math.exp %40 : vector<256x128xf32>
    %cst_28 = arith.constant 1.000000e+00 : f32
    %42 = vector.broadcast %cst_28 : f32 to vector<256x128xf32>
    %43 = arith.addf %42, %41 : vector<256x128xf32>
    %44 = tpu.reciprocal %43 {approx = true} : vector<256x128xf32> -> vector<256x128xf32>
    %45 = tpu.iota {dimensions = array<i32: 1>} : vector<256x128xi32>
    %c10_i32 = arith.constant 10 : i32
    %46 = vector.broadcast %c10_i32 : i32 to vector<256x128xi32>
    %47 = arith.cmpi eq, %45, %46 : vector<256x128xi32>
    %48 = arith.select %47, %44, %29 : vector<256x128xi1>, vector<256x128xf32>
    %c0_29 = arith.constant 0 : index
    %c0_30 = arith.constant 0 : index
    %49 = vector.load %arg12[%c0_29, %c0_30] : memref<256x128xf32, #tpu.memory_space<vmem>>, vector<256x128xf32>
    tpu.vector_store %arg12[%c0_29, %c0_30], %48 {strides = array<i32>} : memref<256x128xf32, #tpu.memory_space<vmem>>, vector<256x128xf32>,
    return
  }
  func.func @transform_0(%arg0: i32) -> (i32, i32) {
    %c0_i32 = arith.constant 0 : i32
    %c0_i32_0 = arith.constant 0 : i32
    return %arg0, %c0_i32 : i32, i32
  }
  func.func @transform_1(%arg0: i32) -> (i32, i32) {
    %c0_i32 = arith.constant 0 : i32
    %c0_i32_0 = arith.constant 0 : i32
    %c0_i32_1 = arith.constant 0 : i32
    return %c0_i32, %c0_i32_0 : i32, i32
  }
  func.func @transform_2(%arg0: i32) -> (i32, i32) {
    %c0_i32 = arith.constant 0 : i32
    %c0_i32_0 = arith.constant 0 : i32
    %c0_i32_1 = arith.constant 0 : i32
    return %c0_i32, %c0_i32_0 : i32, i32
  }
  func.func @transform_3(%arg0: i32) -> (i32, i32) {
    %c0_i32 = arith.constant 0 : i32
    %c0_i32_0 = arith.constant 0 : i32
    %c0_i32_1 = arith.constant 0 : i32
    return %c0_i32, %c0_i32_0 : i32, i32
  }
  func.func @transform_4(%arg0: i32) -> (i32, i32) {
    %c0_i32 = arith.constant 0 : i32
    %c0_i32_0 = arith.constant 0 : i32
    %c0_i32_1 = arith.constant 0 : i32
    return %c0_i32, %c0_i32_0 : i32, i32
  }
  func.func @transform_5(%arg0: i32) -> (i32, i32) {
    %c0_i32 = arith.constant 0 : i32
    %c0_i32_0 = arith.constant 0 : i32
    %c0_i32_1 = arith.constant 0 : i32
    return %c0_i32, %c0_i32_0 : i32, i32
  }
  func.func @transform_6(%arg0: i32) -> (i32, i32) {
    %c0_i32 = arith.constant 0 : i32
    %c0_i32_0 = arith.constant 0 : i32
    %c0_i32_1 = arith.constant 0 : i32
    return %c0_i32, %c0_i32_0 : i32, i32
  }
  func.func @transform_7(%arg0: i32) -> (i32, i32) {
    %c0_i32 = arith.constant 0 : i32
    %c0_i32_0 = arith.constant 0 : i32
    %c0_i32_1 = arith.constant 0 : i32
    return %c0_i32, %c0_i32_0 : i32, i32
  }
  func.func @transform_8(%arg0: i32) -> (i32, i32) {
    %c0_i32 = arith.constant 0 : i32
    %c0_i32_0 = arith.constant 0 : i32
    %c0_i32_1 = arith.constant 0 : i32
    return %c0_i32, %c0_i32_0 : i32, i32
  }
  func.func @transform_9(%arg0: i32) -> (i32, i32) {
    %c0_i32 = arith.constant 0 : i32
    %c0_i32_0 = arith.constant 0 : i32
    %c0_i32_1 = arith.constant 0 : i32
    return %c0_i32, %c0_i32_0 : i32, i32
  }
  func.func @transform_10(%arg0: i32) -> (i32, i32) {
    %c0_i32 = arith.constant 0 : i32
    %c0_i32_0 = arith.constant 0 : i32
    %c0_i32_1 = arith.constant 0 : i32
    return %c0_i32, %c0_i32_0 : i32, i32
  }
  func.func @transform_11(%arg0: i32) -> (i32, i32) {
    %c0_i32 = arith.constant 0 : i32
    %c0_i32_0 = arith.constant 0 : i32
    return %arg0, %c0_i32 : i32, i32
  }
}

</mosaic_0001>

<llo_original>
// kernel: mlp_learn_forward.1
$region0: #{mlp_learn_forward.1}
  #allocation0 [shape = 'u32[]', space=smem, size = 0x4, offset = 0x4, fixed_abs, tag = 'smem constant byte address 0x4 - core index']
  #allocation1 [shape = 'u32[144,128]{1,0:T(1,128)}', space=vmem, size = 0x12000, scoped, tag = 'internal scratch']
  %s0 = inlined_call_operand.vmem [shape: f32[512,128], index: 0, kind: input, shape index: {}]
  %s1 = inlined_call_operand.vmem [shape: bf16[128,128], index: 1, kind: input, shape index: {}]
  %s2 = inlined_call_operand.vmem [shape: f32[1,128], index: 2, kind: input, shape index: {}]
  %s3 = inlined_call_operand.vmem [shape: f32[1,128], index: 3, kind: input, shape index: {}]
  %s4 = inlined_call_operand.vmem [shape: bf16[128,128], index: 4, kind: input, shape index: {}]
  %s5 = inlined_call_operand.vmem [shape: f32[1,128], index: 5, kind: input, shape index: {}]
  %s6 = inlined_call_operand.vmem [shape: f32[1,128], index: 6, kind: input, shape index: {}]
  %s7 = inlined_call_operand.vmem [shape: bf16[128,256], index: 7, kind: input, shape index: {}]
  %s8 = inlined_call_operand.vmem [shape: f32[1,256], index: 8, kind: input, shape index: {}]
  %s9 = inlined_call_operand.vmem [shape: bf16[128,128], index: 9, kind: input, shape index: {}]
  %s10 = inlined_call_operand.vmem [shape: f32[1,128], index: 10, kind: input, shape index: {}]
  %s11 = inlined_call_operand.vmem [shape: f32[512,128], index: 11, kind: output, shape index: {}]
  %s12 = sld [smem:[#allocation0]]
  $region77: #{mlp_learn_forward.1} parent=0
    _
  %s14 = ssub.s32 1, %s12
  %s15 = scalar_select 0, %s14, %s12
  loop: start=0, step=1, limit=4
  $region2: #{mlp_learn_forward.1} parent=0 // loop_pre_header
    _
  $region3: #{mlp_learn_forward.1} parent=0 // loop_header
    %s17 = sphi 0, %s21
    %p18 = scmp.ge.s32.totalorder %s17, 4
    %s27 = sphi 0, %s29
    %s30 = sphi 0, %s27
    %s31 = sphi 0, %s30
    %s47 = sphi 0, %s31
    %s51 = sphi 0, %s51
    %s53 = sphi 0, %s51
    %s54 = sphi 0, %s53
    %s68 = sphi 0, %s54
    %s72 = sphi 0, %s72
    %s74 = sphi 0, %s72
    %s75 = sphi 0, %s74
    %s89 = sphi 0, %s75
    %s93 = sphi 0, %s93
    %s95 = sphi 0, %s93
    %s96 = sphi 0, %s95
    %s110 = sphi 0, %s96
    %s114 = sphi 0, %s114
    %s116 = sphi 0, %s114
    %s117 = sphi 0, %s116
    %s131 = sphi 0, %s117
    %s135 = sphi 0, %s135
    %s137 = sphi 0, %s135
    %s138 = sphi 0, %s137
    %s152 = sphi 0, %s138
    %s156 = sphi 0, %s156
    %s158 = sphi 0, %s156
    %s159 = sphi 0, %s158
    %s173 = sphi 0, %s159
    %s177 = sphi 0, %s177
    %s179 = sphi 0, %s177
    %s180 = sphi 0, %s179
    %s194 = sphi 0, %s180
    %s198 = sphi 0, %s198
    %s200 = sphi 0, %s198
    %s201 = sphi 0, %s200
    %s215 = sphi 0, %s201
    %s219 = sphi 0, %s219
    %s221 = sphi 0, %s219
    %s222 = sphi 0, %s221
    %s236 = sphi 0, %s222
    %s240 = sphi 0, %s240
    %s242 = sphi 0, %s240
    %s243 = sphi 0, %s242
    %s257 = sphi 0, %s243
    %s263 = sphi 0, %s265
    %s266 = sphi 0, %s263
    %s267 = sphi 0, %s266
    %s283 = sphi 0, %s267
  $region4: #{mlp_learn_forward.1} parent=0 // loop_header_branch
    %20 = sbr.rel (%p18) target = $region8
  $region5: #{mlp_learn_forward.1} parent=0 // loop_body
    %s22 = ssub.s32 %s17, 1
    %s23 = ssub.s32 %s17, 2
    %s24 = sadd.s32 %s17, 1
    %s25 = ssub.s32 %s17, %s24
    %p26 = scmp.eq.s32.totalorder %s25, 0
    %s28 = sadd.s32 %s27, 1
    %s29 = scalar_select %p26, %s27, %s28
    %p32 = pneg %p26
    %p33 = scmp.eq.s32.totalorder %s17, 1
    %p34 = por %p32, %p33
    %p35 = scmp.ne.s32.totalorder %s27, %s30
    %p36 = scmp.eq.s32.totalorder %s17, 0
    %p37 = por %p35, %p36
    %p38 = scmp.ne.s32.totalorder %s27, %s30
    %p39 = scmp.eq.s32.totalorder %s22, 1
    %p40 = por %p38, %p39
    %p41 = scmp.ne.s32.totalorder %s30, %s31
    %p42 = scmp.eq.s32.totalorder %s22, 0
    %p43 = por %p41, %p42
    %p44 = scmp.ne.s32.totalorder %s30, %s31
    %p45 = scmp.eq.s32.totalorder %s23, 1
    %p46 = por %p44, %p45
    %p48 = scmp.ne.s32.totalorder %s31, %s47
    %p49 = scmp.eq.s32.totalorder %s23, 0
    %p50 = por %p48, %p49
    %s52 = sadd.s32 %s51, 1
    %p55 = scmp.eq.s32.totalorder %s17, 1
    %p56 = scmp.ne.s32.totalorder %s51, %s53
    %p57 = scmp.eq.s32.totalorder %s17, 0
    %p58 = por %p56, %p57
    %p59 = scmp.ne.s32.totalorder %s51, %s53
    %p60 = scmp.eq.s32.totalorder %s22, 1
    %p61 = por %p59, %p60
    %p62 = scmp.ne.s32.totalorder %s53, %s54
    %p63 = scmp.eq.s32.totalorder %s22, 0
    %p64 = por %p62, %p63
    %p65 = scmp.ne.s32.totalorder %s53, %s54
    %p66 = scmp.eq.s32.totalorder %s23, 1
    %p67 = por %p65, %p66
    %p69 = scmp.ne.s32.totalorder %s54, %s68
    %p70 = scmp.eq.s32.totalorder %s23, 0
    %p71 = por %p69, %p70
    %s73 = sadd.s32 %s72, 1
    %p76 = scmp.eq.s32.totalorder %s17, 1
    %p77 = scmp.ne.s32.totalorder %s72, %s74
    %p78 = scmp.eq.s32.totalorder %s17, 0
    %p79 = por %p77, %p78
    %p80 = scmp.ne.s32.totalorder %s72, %s74
    %p81 = scmp.eq.s32.totalorder %s22, 1
    %p82 = por %p80, %p81
    %p83 = scmp.ne.s32.totalorder %s74, %s75
    %p84 = scmp.eq.s32.totalorder %s22, 0
    %p85 = por %p83, %p84
    %p86 = scmp.ne.s32.totalorder %s74, %s75
    %p87 = scmp.eq.s32.totalorder %s23, 1
    %p88 = por %p86, %p87
    %p90 = scmp.ne.s32.totalorder %s75, %s89
    %p91 = scmp.eq.s32.totalorder %s23, 0
    %p92 = por %p90, %p91
    %s94 = sadd.s32 %s93, 1
    %p97 = scmp.eq.s32.totalorder %s17, 1
    %p98 = scmp.ne.s32.totalorder %s93, %s95
    %p99 = scmp.eq.s32.totalorder %s17, 0
    %p100 = por %p98, %p99
    %p101 = scmp.ne.s32.totalorder %s93, %s95
    %p102 = scmp.eq.s32.totalorder %s22, 1
    %p103 = por %p101, %p102
    %p104 = scmp.ne.s32.totalorder %s95, %s96
    %p105 = scmp.eq.s32.totalorder %s22, 0
    %p106 = por %p104, %p105
    %p107 = scmp.ne.s32.totalorder %s95, %s96
    %p108 = scmp.eq.s32.totalorder %s23, 1
    %p109 = por %p107, %p108
    %p111 = scmp.ne.s32.totalorder %s96, %s110
    %p112 = scmp.eq.s32.totalorder %s23, 0
    %p113 = por %p111, %p112
    %s115 = sadd.s32 %s114, 1
    %p118 = scmp.eq.s32.totalorder %s17, 1
    %p119 = scmp.ne.s32.totalorder %s114, %s116
    %p120 = scmp.eq.s32.totalorder %s17, 0
    %p121 = por %p119, %p120
    %p122 = scmp.ne.s32.totalorder %s114, %s116
    %p123 = scmp.eq.s32.totalorder %s22, 1
    %p124 = por %p122, %p123
    %p125 = scmp.ne.s32.totalorder %s116, %s117
    %p126 = scmp.eq.s32.totalorder %s22, 0
    %p127 = por %p125, %p126
    %p128 = scmp.ne.s32.totalorder %s116, %s117
    %p129 = scmp.eq.s32.totalorder %s23, 1
    %p130 = por %p128, %p129
    %p132 = scmp.ne.s32.totalorder %s117, %s131
    %p133 = scmp.eq.s32.totalorder %s23, 0
    %p134 = por %p132, %p133
    %s136 = sadd.s32 %s135, 1
    %p139 = scmp.eq.s32.totalorder %s17, 1
    %p140 = scmp.ne.s32.totalorder %s135, %s137
    %p141 = scmp.eq.s32.totalorder %s17, 0
    %p142 = por %p140, %p141
    %p143 = scmp.ne.s32.totalorder %s135, %s137
    %p144 = scmp.eq.s32.totalorder %s22, 1
    %p145 = por %p143, %p144
    %p146 = scmp.ne.s32.totalorder %s137, %s138
    %p147 = scmp.eq.s32.totalorder %s22, 0
    %p148 = por %p146, %p147
    %p149 = scmp.ne.s32.totalorder %s137, %s138
    %p150 = scmp.eq.s32.totalorder %s23, 1
    %p151 = por %p149, %p150
    %p153 = scmp.ne.s32.totalorder %s138, %s152
    %p154 = scmp.eq.s32.totalorder %s23, 0
    %p155 = por %p153, %p154
    %s157 = sadd.s32 %s156, 1
    %p160 = scmp.eq.s32.totalorder %s17, 1
    %p161 = scmp.ne.s32.totalorder %s156, %s158
    %p162 = scmp.eq.s32.totalorder %s17, 0
    %p163 = por %p161, %p162
    %p164 = scmp.ne.s32.totalorder %s156, %s158
    %p165 = scmp.eq.s32.totalorder %s22, 1
    %p166 = por %p164, %p165
    %p167 = scmp.ne.s32.totalorder %s158, %s159
    %p168 = scmp.eq.s32.totalorder %s22, 0
    %p169 = por %p167, %p168
    %p170 = scmp.ne.s32.totalorder %s158, %s159
    %p171 = scmp.eq.s32.totalorder %s23, 1
    %p172 = por %p170, %p171
    %p174 = scmp.ne.s32.totalorder %s159, %s173
    %p175 = scmp.eq.s32.totalorder %s23, 0
    %p176 = por %p174, %p175
    %s178 = sadd.s32 %s177, 1
    %p181 = scmp.eq.s32.totalorder %s17, 1
    %p182 = scmp.ne.s32.totalorder %s177, %s179
    %p183 = scmp.eq.s32.totalorder %s17, 0
    %p184 = por %p182, %p183
    %p185 = scmp.ne.s32.totalorder %s177, %s179
    %p186 = scmp.eq.s32.totalorder %s22, 1
    %p187 = por %p185, %p186
    %p188 = scmp.ne.s32.totalorder %s179, %s180
    %p189 = scmp.eq.s32.totalorder %s22, 0
    %p190 = por %p188, %p189
    %p191 = scmp.ne.s32.totalorder %s179, %s180
    %p192 = scmp.eq.s32.totalorder %s23, 1
    %p193 = por %p191, %p192
    %p195 = scmp.ne.s32.totalorder %s180, %s194
    %p196 = scmp.eq.s32.totalorder %s23, 0
    %p197 = por %p195, %p196
    %s199 = sadd.s32 %s198, 1
    %p202 = scmp.eq.s32.totalorder %s17, 1
    %p203 = scmp.ne.s32.totalorder %s198, %s200
    %p204 = scmp.eq.s32.totalorder %s17, 0
    %p205 = por %p203, %p204
    %p206 = scmp.ne.s32.totalorder %s198, %s200
    %p207 = scmp.eq.s32.totalorder %s22, 1
    %p208 = por %p206, %p207
    %p209 = scmp.ne.s32.totalorder %s200, %s201
    %p210 = scmp.eq.s32.totalorder %s22, 0
    %p211 = por %p209, %p210
    %p212 = scmp.ne.s32.totalorder %s200, %s201
    %p213 = scmp.eq.s32.totalorder %s23, 1
    %p214 = por %p212, %p213
    %p216 = scmp.ne.s32.totalorder %s201, %s215
    %p217 = scmp.eq.s32.totalorder %s23, 0
    %p218 = por %p216, %p217
    %s220 = sadd.s32 %s219, 1
    %p223 = scmp.eq.s32.totalorder %s17, 1
    %p224 = scmp.ne.s32.totalorder %s219, %s221
    %p225 = scmp.eq.s32.totalorder %s17, 0
    %p226 = por %p224, %p225
    %p227 = scmp.ne.s32.totalorder %s219, %s221
    %p228 = scmp.eq.s32.totalorder %s22, 1
    %p229 = por %p227, %p228
    %p230 = scmp.ne.s32.totalorder %s221, %s222
    %p231 = scmp.eq.s32.totalorder %s22, 0
    %p232 = por %p230, %p231
    %p233 = scmp.ne.s32.totalorder %s221, %s222
    %p234 = scmp.eq.s32.totalorder %s23, 1
    %p235 = por %p233, %p234
    %p237 = scmp.ne.s32.totalorder %s222, %s236
    %p238 = scmp.eq.s32.totalorder %s23, 0
    %p239 = por %p237, %p238
    %s241 = sadd.s32 %s240, 1
    %p244 = scmp.eq.s32.totalorder %s17, 1
    %p245 = scmp.ne.s32.totalorder %s240, %s242
    %p246 = scmp.eq.s32.totalorder %s17, 0
    %p247 = por %p245, %p246
    %p248 = scmp.ne.s32.totalorder %s240, %s242
    %p249 = scmp.eq.s32.totalorder %s22, 1
    %p250 = por %p248, %p249
    %p251 = scmp.ne.s32.totalorder %s242, %s243
    %p252 = scmp.eq.s32.totalorder %s22, 0
    %p253 = por %p251, %p252
    %p254 = scmp.ne.s32.totalorder %s242, %s243
    %p255 = scmp.eq.s32.totalorder %s23, 1
    %p256 = por %p254, %p255
    %p258 = scmp.ne.s32.totalorder %s243, %s257
    %p259 = scmp.eq.s32.totalorder %s23, 0
    %p260 = por %p258, %p259
    %s261 = ssub.s32 %s17, %s24
    %p262 = scmp.eq.s32.totalorder %s261, 0
    %s264 = sadd.s32 %s263, 1
    %s265 = scalar_select %p262, %s263, %s264
    %p268 = pneg %p262
    %p269 = scmp.eq.s32.totalorder %s17, 1
    %p270 = por %p268, %p269
    %p271 = scmp.ne.s32.totalorder %s263, %s266
    %p272 = scmp.eq.s32.totalorder %s17, 0
    %p273 = por %p271, %p272
    %p274 = scmp.ne.s32.totalorder %s263, %s266
    %p275 = scmp.eq.s32.totalorder %s22, 1
    %p276 = por %p274, %p275
    %p277 = scmp.ne.s32.totalorder %s266, %s267
    %p278 = scmp.eq.s32.totalorder %s22, 0
    %p279 = por %p277, %p278
    %p280 = scmp.ne.s32.totalorder %s266, %s267
    %p281 = scmp.eq.s32.totalorder %s23, 1
    %p282 = por %p280, %p281
    %p284 = scmp.ne.s32.totalorder %s267, %s283
    %p285 = scmp.eq.s32.totalorder %s23, 0
    %p286 = por %p284, %p285
    %p287 = scmp.le.s32.totalorder 1, %s17
    %p288 = scmp.lt.s32.totalorder %s17, 3
    %p289 = pnand %p287, %p288
    %p290 = pneg %p289
    // Predicated region
    $region9: #{mlp_learn_forward.1} parent=5 // pred_check
      _
    $region10: #{mlp_learn_forward.1} parent=5 // pred_check_branch
      %292 = sbr.rel (%p289) target = $region12
    $region11: #{mlp_learn_forward.1} parent=5 // pred_region
      %s293 = ssub.s32 %s17, 1
      // Predicated region
      $region13: #{mlp_learn_forward.1} parent=11 // pred_check
        %p294 = pneg %p64
      $region14: #{mlp_learn_forward.1} parent=11 // pred_check_branch
        %296 = sbr.rel (%p294) target = $region16
      $region15: #{mlp_learn_forward.1} parent=11 // pred_region
        _
      $region16: #{mlp_learn_forward.1} parent=11 // pred_fallthru
        _
      // Predicated region
      $region17: #{mlp_learn_forward.1} parent=11 // pred_check
        %p297 = pneg %p85
      $region18: #{mlp_learn_forward.1} parent=11 // pred_check_branch
        %299 = sbr.rel (%p297) target = $region20
      $region19: #{mlp_learn_forward.1} parent=11 // pred_region
        _
      $region20: #{mlp_learn_forward.1} parent=11 // pred_fallthru
        _
      // Predicated region
      $region21: #{mlp_learn_forward.1} parent=11 // pred_check
        %p300 = pneg %p106
      $region22: #{mlp_learn_forward.1} parent=11 // pred_check_branch
        %302 = sbr.rel (%p300) target = $region24
      $region23: #{mlp_learn_forward.1} parent=11 // pred_region
        _
      $region24: #{mlp_learn_forward.1} parent=11 // pred_fallthru
        _
      // Predicated region
      $region25: #{mlp_learn_forward.1} parent=11 // pred_check
        %p303 = pneg %p127
      $region26: #{mlp_learn_forward.1} parent=11 // pred_check_branch
        %305 = sbr.rel (%p303) target = $region28
      $region27: #{mlp_learn_forward.1} parent=11 // pred_region
        _
      $region28: #{mlp_learn_forward.1} parent=11 // pred_fallthru
        _
      // Predicated region
      $region29: #{mlp_learn_forward.1} parent=11 // pred_check
        %p306 = pneg %p148
      $region30: #{mlp_learn_forward.1} parent=11 // pred_check_branch
        %308 = sbr.rel (%p306) target = $region32
      $region31: #{mlp_learn_forward.1} parent=11 // pred_region
        _
      $region32: #{mlp_learn_forward.1} parent=11 // pred_fallthru
        _
      // Predicated region
      $region33: #{mlp_learn_forward.1} parent=11 // pred_check
        %p309 = pneg %p169
      $region34: #{mlp_learn_forward.1} parent=11 // pred_check_branch
        %311 = sbr.rel (%p309) target = $region36
      $region35: #{mlp_learn_forward.1} parent=11 // pred_region
        _
      $region36: #{mlp_learn_forward.1} parent=11 // pred_fallthru
        _
      // Predicated region
      $region37: #{mlp_learn_forward.1} parent=11 // pred_check
        %p312 = pneg %p190
      $region38: #{mlp_learn_forward.1} parent=11 // pred_check_branch
        %314 = sbr.rel (%p312) target = $region40
      $region39: #{mlp_learn_forward.1} parent=11 // pred_region
        _
      $region40: #{mlp_learn_forward.1} parent=11 // pred_fallthru
        _
      // Predicated region
      $region41: #{mlp_learn_forward.1} parent=11 // pred_check
        %p315 = pneg %p211
      $region42: #{mlp_learn_forward.1} parent=11 // pred_check_branch
        %317 = sbr.rel (%p315) target = $region44
      $region43: #{mlp_learn_forward.1} parent=11 // pred_region
        _
      $region44: #{mlp_learn_forward.1} parent=11 // pred_fallthru
        _
      // Predicated region
      $region45: #{mlp_learn_forward.1} parent=11 // pred_check
        %p318 = pneg %p232
      $region46: #{mlp_learn_forward.1} parent=11 // pred_check_branch
        %320 = sbr.rel (%p318) target = $region48
      $region47: #{mlp_learn_forward.1} parent=11 // pred_region
        _
      $region48: #{mlp_learn_forward.1} parent=11 // pred_fallthru
        _
      // Predicated region
      $region49: #{mlp_learn_forward.1} parent=11 // pred_check
        %p321 = pneg %p253
      $region50: #{mlp_learn_forward.1} parent=11 // pred_check_branch
        %323 = sbr.rel (%p321) target = $region52
      $region51: #{mlp_learn_forward.1} parent=11 // pred_region
        _
      $region52: #{mlp_learn_forward.1} parent=11 // pred_fallthru
        _
    $region12: #{mlp_learn_forward.1} parent=5 // pred_fallthru
      _
    %p324 = scmp.lt.s32.totalorder %s17, 2
    // Predicated region
    $region53: #{mlp_learn_forward.1} parent=5 // pred_check
      %p325 = pneg %p324
    $region54: #{mlp_learn_forward.1} parent=5 // pred_check_branch
      %327 = sbr.rel (%p325) target = $region56
    $region55: #{mlp_learn_forward.1} parent=5 // pred_region
      // Predicated region
      $region57: #{mlp_learn_forward.1} parent=55 // pred_check
        %p328 = pneg %p37
      $region58: #{mlp_learn_forward.1} parent=55 // pred_check_branch
        %330 = sbr.rel (%p328) target = $region60
      $region59: #{mlp_learn_forward.1} parent=55 // pred_region
        %s331 = smul.u32 32, %s17
        %p332 = scmp.lt.s32.totalorder %s331, 63
        %s333 = scalar_select %p332, %s331, 63
        %s334 = smul.addr %s333, 8
        %s335 = scalar_lea.vmem %s0, %s334
        %s336 = smul.u32 32, %s17
      $region60: #{mlp_learn_forward.1} parent=55 // pred_fallthru
        _
    $region56: #{mlp_learn_forward.1} parent=5 // pred_fallthru
      _
    %p337 = scmp.le.s32.totalorder 1, %s17
    %p338 = scmp.lt.s32.totalorder %s17, 3
    %p339 = pnand %p337, %p338
    %p340 = pneg %p339
    // Predicated region
    $region61: #{mlp_learn_forward.1} parent=5 // pred_check
      _
    $region62: #{mlp_learn_forward.1} parent=5 // pred_check_branch
      %342 = sbr.rel (%p339) target = $region64
    $region63: #{mlp_learn_forward.1} parent=5 // pred_region
      %s343 = ssub.s32 %s17, 1
      %s344 = smul.u32 32, %s22
      %p345 = scmp.lt.s32.totalorder %s344, 63
      %s346 = scalar_select %p345, %s344, 63
      %s347 = smul.addr %s346, 8
      %s348 = scalar_lea.vmem %s0, %s347
      %p349 = pneg %p43
      %p350 = pneg %p40
      %p351 = pneg %p64
      %p352 = pneg %p61
      %p353 = pneg %p85
      %p354 = pneg %p82
      %p355 = pneg %p106
      %p356 = pneg %p103
      %p357 = pneg %p127
      %p358 = pneg %p124
      %p359 = pneg %p148
      %p360 = pneg %p145
      %p361 = pneg %p169
      %p362 = pneg %p166
      %p363 = pneg %p190
      %p364 = pneg %p187
      %p365 = pneg %p211
      %p366 = pneg %p208
      %p367 = pneg %p232
      %p368 = pneg %p229
      %p369 = pneg %p253
      %p370 = pneg %p250
      %p371 = pneg %p279
      %p372 = pneg %p276
      %s373 = smul.u32 32, %s22
      %p374 = scmp.lt.s32.totalorder %s373, 63
      %s375 = scalar_select %p374, %s373, 63
      %s376 = smul.addr %s375, 8
      %s377 = scalar_lea.vmem %s11, %s376
      %s378 = smul.u32 32, %s22
      %p379 = scmp.lt.s32.totalorder %s378, 63
      %s380 = scalar_select %p379, %s378, 63
      %s381 = smul.addr %s380, 8
      %s382 = scalar_lea.vmem %s0, %s381
      %s383 = smul.u32 32, %s22
      %s384 = smul.u32 32, %s22
      %p385 = scmp.lt.s32.totalorder %s384, 63
      %s386 = scalar_select %p385, %s384, 63
      %s387 = smul.addr %s386, 8
      %s388 = scalar_lea.vmem %s11, %s387
      %s389 = smul.u32 32, %s22
      %v391 = vld [vmem:[%s382] sm:$0xff]
      %v392 = vld [vmem:[%s382 + $0x8] sm:$0xff]
      %v393 = vld [vmem:[%s382 + $0x10] sm:$0xff]
      %v394 = vld [vmem:[%s382 + $0x18] sm:$0xff]
      %v395 = vld [vmem:[%s382 + $0x20] sm:$0xff]
      %v396 = vld [vmem:[%s382 + $0x28] sm:$0xff]
      %v397 = vld [vmem:[%s382 + $0x30] sm:$0xff]
      %v398 = vld [vmem:[%s382 + $0x38] sm:$0xff]
      %v399 = vld [vmem:[%s382 + $0x40] sm:$0xff]
      %v400 = vld [vmem:[%s382 + $0x48] sm:$0xff]
      %v401 = vld [vmem:[%s382 + $0x50] sm:$0xff]
      %v402 = vld [vmem:[%s382 + $0x58] sm:$0xff]
      %v403 = vld [vmem:[%s382 + $0x60] sm:$0xff]
      %v404 = vld [vmem:[%s382 + $0x68] sm:$0xff]
      %v405 = vld [vmem:[%s382 + $0x70] sm:$0xff]
      %v406 = vld [vmem:[%s382 + $0x78] sm:$0xff]
      %v407 = vld [vmem:[%s382 + $0x80] sm:$0xff]
      %v408 = vld [vmem:[%s382 + $0x88] sm:$0xff]
      %v409 = vld [vmem:[%s382 + $0x90] sm:$0xff]
      %v410 = vld [vmem:[%s382 + $0x98] sm:$0xff]
      %v411 = vld [vmem:[%s382 + $0xa0] sm:$0xff]
      %v412 = vld [vmem:[%s382 + $0xa8] sm:$0xff]
      %v413 = vld [vmem:[%s382 + $0xb0] sm:$0xff]
      %v414 = vld [vmem:[%s382 + $0xb8] sm:$0xff]
      %v415 = vld [vmem:[%s382 + $0xc0] sm:$0xff]
      %v416 = vld [vmem:[%s382 + $0xc8] sm:$0xff]
      %v417 = vld [vmem:[%s382 + $0xd0] sm:$0xff]
      %v418 = vld [vmem:[%s382 + $0xd8] sm:$0xff]
      %v419 = vld [vmem:[%s382 + $0xe0] sm:$0xff]
      %v420 = vld [vmem:[%s382 + $0xe8] sm:$0xff]
      %v421 = vld [vmem:[%s382 + $0xf0] sm:$0xff]
      %v422 = vld [vmem:[%s382 + $0xf8] sm:$0xff]
      %v423 = vpack.c.bf16 %v392, %v391
      %v424 = vpack.c.bf16 %v394, %v393
      %v425 = vpack.c.bf16 %v396, %v395
      %v426 = vpack.c.bf16 %v398, %v397
      %v427 = vpack.c.bf16 %v400, %v399
      %v428 = vpack.c.bf16 %v402, %v401
      %v429 = vpack.c.bf16 %v404, %v403
      %v430 = vpack.c.bf16 %v406, %v405
      %v431 = vpack.c.bf16 %v408, %v407
      %v432 = vpack.c.bf16 %v410, %v409
      %v433 = vpack.c.bf16 %v412, %v411
      %v434 = vpack.c.bf16 %v414, %v413
      %v435 = vpack.c.bf16 %v416, %v415
      %v436 = vpack.c.bf16 %v418, %v417
      %v437 = vpack.c.bf16 %v420, %v419
      %v438 = vpack.c.bf16 %v422, %v421
      %v439 = vld [vmem:[%s1] sm:$0xf]
      %v440 = vld [vmem:[%s1 + $0x4] sm:$0xf]
      %v441 = vld [vmem:[%s1 + $0x8] sm:$0xf]
      %v442 = vld [vmem:[%s1 + $0xc] sm:$0xf]
      %v443 = vld [vmem:[%s1 + $0x10] sm:$0xf]
      %v444 = vld [vmem:[%s1 + $0x14] sm:$0xf]
      %v445 = vld [vmem:[%s1 + $0x18] sm:$0xf]
      %v446 = vld [vmem:[%s1 + $0x1c] sm:$0xf]
      %v447 = vld [vmem:[%s1 + $0x20] sm:$0xf]
      %v448 = vld [vmem:[%s1 + $0x24] sm:$0xf]
      %v449 = vld [vmem:[%s1 + $0x28] sm:$0xf]
      %v450 = vld [vmem:[%s1 + $0x2c] sm:$0xf]
      %v451 = vld [vmem:[%s1 + $0x30] sm:$0xf]
      %v452 = vld [vmem:[%s1 + $0x34] sm:$0xf]
      %v453 = vld [vmem:[%s1 + $0x38] sm:$0xf]
      %v454 = vld [vmem:[%s1 + $0x3c] sm:$0xf]
      %v471 = vunpack.c.l.b16 %v439
      %v472 = vunpack.c.l.b16 %v440
      %v473 = vunpack.c.l.b16 %v441
      %v474 = vunpack.c.l.b16 %v442
      %v475 = vunpack.c.l.b16 %v443
      %v476 = vunpack.c.l.b16 %v444
      %v477 = vunpack.c.l.b16 %v445
      %v478 = vunpack.c.l.b16 %v446
      %v479 = vunpack.c.l.b16 %v447
      %v480 = vunpack.c.l.b16 %v448
      %v481 = vunpack.c.l.b16 %v449
      %v482 = vunpack.c.l.b16 %v450
      %v483 = vunpack.c.l.b16 %v451
      %v484 = vunpack.c.l.b16 %v452
      %v485 = vunpack.c.l.b16 %v453
      %v486 = vunpack.c.l.b16 %v454
      %v487 = vpack.c.b16 %v472, %v471
      %v488 = vpack.c.b16 %v474, %v473
      %v489 = vpack.c.b16 %v476, %v475
      %v490 = vpack.c.b16 %v478, %v477
      %v491 = vpack.c.b16 %v480, %v479
      %v492 = vpack.c.b16 %v482, %v481
      %v493 = vpack.c.b16 %v484, %v483
      %v494 = vpack.c.b16 %v486, %v485
      %503 = vmatprep.subr.bf16.mxu0 0
      %504 = vmatpush1.bf16.msra.mxu0 %v487
      %505 = vmatprep.subr.bf16.mxu0 0
      %506 = vmatpush1.bf16.msra.mxu0 %v488
      %507 = vmatprep.subr.bf16.mxu0 0
      %508 = vmatpush1.bf16.msra.mxu0 %v489
      %509 = vmatprep.subr.bf16.mxu0 0
      %510 = vmatpush1.bf16.msra.mxu0 %v490
      %511 = vmatprep.subr.bf16.mxu0 0
      %512 = vmatpush1.bf16.msra.mxu0 %v491
      %513 = vmatprep.subr.bf16.mxu0 0
      %514 = vmatpush1.bf16.msra.mxu0 %v492
      %515 = vmatprep.subr.bf16.mxu0 0
      %516 = vmatpush1.bf16.msra.mxu0 %v493
      %517 = vmatprep.subr.bf16.mxu0 0
      %518 = vmatpush1.bf16.msra.mxu0 %v494
      %519 = vmatprep.subr.bf16.mxu0 0
      %520 = vmatpush1.bf16.msra.mxu0 0
      %521 = vmatprep.subr.bf16.mxu0 0
      %522 = vmatpush1.bf16.msra.mxu0 0
      %523 = vmatprep.subr.bf16.mxu0 0
      %524 = vmatpush1.bf16.msra.mxu0 0
      %525 = vmatprep.subr.bf16.mxu0 0
      %526 = vmatpush1.bf16.msra.mxu0 0
      %527 = vmatprep.subr.bf16.mxu0 0
      %528 = vmatpush1.bf16.msra.mxu0 0
      %529 = vmatprep.subr.bf16.mxu0 0
      %530 = vmatpush1.bf16.msra.mxu0 0
      %531 = vmatprep.subr.bf16.mxu0 0
      %532 = vmatpush1.bf16.msra.mxu0 0
      %533 = vmatprep.subr.bf16.mxu0 0
      %534 = vmatpush1.bf16.msra.mxu0 0
      %535 = vmatprep.mubr.bf16.mxu0 0
      %536 = vmatmul.mubr.bf16.gmra.mrb[0].mxu0 %v423
      %v537 = vpop.f32.mrb[0].mxu0
      %v538 = vadd.f32 0.0, %v537
      %v539 = vpop.f32.mrb[0].mxu0
      %v540 = vpop.f32.mrb[0].mxu0
      %v541 = vadd.f32 0.0, %v540
      %v542 = vpop.f32.mrb[0].mxu0
      %543 = vmatprep.mubr.bf16.mxu0 0
      %544 = vmatmul.mubr.bf16.gmra.mrb[0].mxu0 %v424
      %v545 = vpop.f32.mrb[0].mxu0
      %v546 = vadd.f32 0.0, %v545
      %v547 = vpop.f32.mrb[0].mxu0
      %v548 = vpop.f32.mrb[0].mxu0
      %v549 = vadd.f32 0.0, %v548
      %v550 = vpop.f32.mrb[0].mxu0
      %551 = vmatprep.mubr.bf16.mxu0 0
      %552 = vmatmul.mubr.bf16.gmra.mrb[0].mxu0 %v425
      %v553 = vpop.f32.mrb[0].mxu0
      %v554 = vadd.f32 0.0, %v553
      %v555 = vpop.f32.mrb[0].mxu0
      %v556 = vpop.f32.mrb[0].mxu0
      %v557 = vadd.f32 0.0, %v556
      %v558 = vpop.f32.mrb[0].mxu0
      %559 = vmatprep.mubr.bf16.mxu0 0
      %560 = vmatmul.mubr.bf16.gmra.mrb[0].mxu0 %v426
      %v561 = vpop.f32.mrb[0].mxu0
      %v562 = vadd.f32 0.0, %v561
      %v563 = vpop.f32.mrb[0].mxu0
      %v564 = vpop.f32.mrb[0].mxu0
      %v565 = vadd.f32 0.0, %v564
      %v566 = vpop.f32.mrb[0].mxu0
      %567 = vmatprep.mubr.bf16.mxu0 0
      %568 = vmatmul.mubr.bf16.gmra.mrb[0].mxu0 %v427
      %v569 = vpop.f32.mrb[0].mxu0
      %v570 = vadd.f32 0.0, %v569
      %v571 = vpop.f32.mrb[0].mxu0
      %v572 = vpop.f32.mrb[0].mxu0
      %v573 = vadd.f32 0.0, %v572
      %v574 = vpop.f32.mrb[0].mxu0
      %575 = vmatprep.mubr.bf16.mxu0 0
      %576 = vmatmul.mubr.bf16.gmra.mrb[0].mxu0 %v428
      %v577 = vpop.f32.mrb[0].mxu0
      %v578 = vadd.f32 0.0, %v577
      %v579 = vpop.f32.mrb[0].mxu0
      %v580 = vpop.f32.mrb[0].mxu0
      %v581 = vadd.f32 0.0, %v580
      %v582 = vpop.f32.mrb[0].mxu0
      %583 = vmatprep.mubr.bf16.mxu0 0
      %584 = vmatmul.mubr.bf16.gmra.mrb[0].mxu0 %v429
      %v585 = vpop.f32.mrb[0].mxu0
      %v586 = vadd.f32 0.0, %v585
      %v587 = vpop.f32.mrb[0].mxu0
      %v588 = vpop.f32.mrb[0].mxu0
      %v589 = vadd.f32 0.0, %v588
      %v590 = vpop.f32.mrb[0].mxu0
      %591 = vmatprep.mubr.bf16.mxu0 0
      %592 = vmatmul.mubr.bf16.gmra.mrb[0].mxu0 %v430
      %v593 = vpop.f32.mrb[0].mxu0
      %v594 = vadd.f32 0.0, %v593
      %v595 = vpop.f32.mrb[0].mxu0
      %v596 = vpop.f32.mrb[0].mxu0
      %v597 = vadd.f32 0.0, %v596
      %v598 = vpop.f32.mrb[0].mxu0
      %599 = vmatprep.mubr.bf16.mxu0 0
      %600 = vmatmul.mubr.bf16.gmra.mrb[0].mxu0 %v431
      %v601 = vpop.f32.mrb[0].mxu0
      %v602 = vadd.f32 0.0, %v601
      %v603 = vpop.f32.mrb[0].mxu0
      %v604 = vpop.f32.mrb[0].mxu0
      %v605 = vadd.f32 0.0, %v604
      %v606 = vpop.f32.mrb[0].mxu0
      %607 = vmatprep.mubr.bf16.mxu0 0
      %608 = vmatmul.mubr.bf16.gmra.mrb[0].mxu0 %v432
      %v609 = vpop.f32.mrb[0].mxu0
      %v610 = vadd.f32 0.0, %v609
      %v611 = vpop.f32.mrb[0].mxu0
      %v612 = vpop.f32.mrb[0].mxu0
      %v613 = vadd.f32 0.0, %v612
      %v614 = vpop.f32.mrb[0].mxu0
      %615 = vmatprep.mubr.bf16.mxu0 0
      %616 = vmatmul.mubr.bf16.gmra.mrb[0].mxu0 %v433
      %v617 = vpop.f32.mrb[0].mxu0
      %v618 = vadd.f32 0.0, %v617
      %v619 = vpop.f32.mrb[0].mxu0
      %v620 = vpop.f32.mrb[0].mxu0
      %v621 = vadd.f32 0.0, %v620
      %v622 = vpop.f32.mrb[0].mxu0
      %623 = vmatprep.mubr.bf16.mxu0 0
      %624 = vmatmul.mubr.bf16.gmra.mrb[0].mxu0 %v434
      %v625 = vpop.f32.mrb[0].mxu0
      %v626 = vadd.f32 0.0, %v625
      %v627 = vpop.f32.mrb[0].mxu0
      %v628 = vpop.f32.mrb[0].mxu0
      %v629 = vadd.f32 0.0, %v628
      %v630 = vpop.f32.mrb[0].mxu0
      %631 = vmatprep.mubr.bf16.mxu0 0
      %632 = vmatmul.mubr.bf16.gmra.mrb[0].mxu0 %v435
      %v633 = vpop.f32.mrb[0].mxu0
      %v634 = vadd.f32 0.0, %v633
      %v635 = vpop.f32.mrb[0].mxu0
      %v636 = vpop.f32.mrb[0].mxu0
      %v637 = vadd.f32 0.0, %v636
      %v638 = vpop.f32.mrb[0].mxu0
      %639 = vmatprep.mubr.bf16.mxu0 0
      %640 = vmatmul.mubr.bf16.gmra.mrb[0].mxu0 %v436
      %v641 = vpop.f32.mrb[0].mxu0
      %v642 = vadd.f32 0.0, %v641
      %v643 = vpop.f32.mrb[0].mxu0
      %v644 = vpop.f32.mrb[0].mxu0
      %v645 = vadd.f32 0.0, %v644
      %v646 = vpop.f32.mrb[0].mxu0
      %647 = vmatprep.mubr.bf16.mxu0 0
      %648 = vmatmul.mubr.bf16.gmra.mrb[0].mxu0 %v437
      %v649 = vpop.f32.mrb[0].mxu0
      %v650 = vadd.f32 0.0, %v649
      %v651 = vpop.f32.mrb[0].mxu0
      %v652 = vpop.f32.mrb[0].mxu0
      %v653 = vadd.f32 0.0, %v652
      %v654 = vpop.f32.mrb[0].mxu0
      %655 = vmatprep.mubr.bf16.mxu0 0
      %656 = vmatmul.mubr.bf16.gmra.mrb[0].mxu0 %v438
      %v657 = vpop.f32.mrb[0].mxu0
      %v658 = vadd.f32 0.0, %v657
      %v659 = vpop.f32.mrb[0].mxu0
      %v660 = vpop.f32.mrb[0].mxu0
      %v661 = vadd.f32 0.0, %v660
      %v662 = vpop.f32.mrb[0].mxu0
      %663 = vdwg.mxu0
      %v664 = vld [vmem:[%s2] sm:$0x1]
      %v666 = vlaneseq
      %v667 = vshrl.u32 %v666, 7
      %v668 = vsub.s32 0, %v667
      %v669 = vrot.slane %v664, %v668
      %v671 = vmul.f32 %v538, %v669
      %v672 = vmul.f32 %v541, %v669
      %v673 = vmul.f32 %v546, %v669
      %v674 = vmul.f32 %v549, %v669
      %v675 = vmul.f32 %v554, %v669
      %v676 = vmul.f32 %v557, %v669
      %v677 = vmul.f32 %v562, %v669
      %v678 = vmul.f32 %v565, %v669
      %v679 = vmul.f32 %v570, %v669
      %v680 = vmul.f32 %v573, %v669
      %v681 = vmul.f32 %v578, %v669
      %v682 = vmul.f32 %v581, %v669
      %v683 = vmul.f32 %v586, %v669
      %v684 = vmul.f32 %v589, %v669
      %v685 = vmul.f32 %v594, %v669
      %v686 = vmul.f32 %v597, %v669
      %v687 = vmul.f32 %v602, %v669
      %v688 = vmul.f32 %v605, %v669
      %v689 = vmul.f32 %v610, %v669
      %v690 = vmul.f32 %v613, %v669
      %v691 = vmul.f32 %v618, %v669
      %v692 = vmul.f32 %v621, %v669
      %v693 = vmul.f32 %v626, %v669
      %v694 = vmul.f32 %v629, %v669
      %v695 = vmul.f32 %v634, %v669
      %v696 = vmul.f32 %v637, %v669
      %v697 = vmul.f32 %v642, %v669
      %v698 = vmul.f32 %v645, %v669
      %v699 = vmul.f32 %v650, %v669
      %v700 = vmul.f32 %v653, %v669
      %v701 = vmul.f32 %v658, %v669
      %v702 = vmul.f32 %v661, %v669
      %v703 = vld [vmem:[%s3] sm:$0x1]
      %v705 = vlaneseq
      %v706 = vshrl.u32 %v705, 7
      %v707 = vsub.s32 0, %v706
      %v708 = vrot.slane %v703, %v707
      %v710 = vadd.f32 %v671, %v708
      %v711 = vadd.f32 %v672, %v708
      %v712 = vadd.f32 %v673, %v708
      %v713 = vadd.f32 %v674, %v708
      %v714 = vadd.f32 %v675, %v708
      %v715 = vadd.f32 %v676, %v708
      %v716 = vadd.f32 %v677, %v708
      %v717 = vadd.f32 %v678, %v708
      %v718 = vadd.f32 %v679, %v708
      %v719 = vadd.f32 %v680, %v708
      %v720 = vadd.f32 %v681, %v708
      %v721 = vadd.f32 %v682, %v708
      %v722 = vadd.f32 %v683, %v708
      %v723 = vadd.f32 %v684, %v708
      %v724 = vadd.f32 %v685, %v708
      %v725 = vadd.f32 %v686, %v708
      %v726 = vadd.f32 %v687, %v708
      %v727 = vadd.f32 %v688, %v708
      %v728 = vadd.f32 %v689, %v708
      %v729 = vadd.f32 %v690, %v708
      %v730 = vadd.f32 %v691, %v708
      %v731 = vadd.f32 %v692, %v708
      %v732 = vadd.f32 %v693, %v708
      %v733 = vadd.f32 %v694, %v708
      %v734 = vadd.f32 %v695, %v708
      %v735 = vadd.f32 %v696, %v708
      %v736 = vadd.f32 %v697, %v708
      %v737 = vadd.f32 %v698, %v708
      %v738 = vadd.f32 %v699, %v708
      %v739 = vadd.f32 %v700, %v708
      %v740 = vadd.f32 %v701, %v708
      %v741 = vadd.f32 %v702, %v708
      %v742 = vmax.f32 %v710, 0.0
      %v743 = vmax.f32 %v711, 0.0
      %v744 = vmax.f32 %v712, 0.0
      %v745 = vmax.f32 %v713, 0.0
      %v746 = vmax.f32 %v714, 0.0
      %v747 = vmax.f32 %v715, 0.0
      %v748 = vmax.f32 %v716, 0.0
      %v749 = vmax.f32 %v717, 0.0
      %v750 = vmax.f32 %v718, 0.0
      %v751 = vmax.f32 %v719, 0.0
      %v752 = vmax.f32 %v720, 0.0
      %v753 = vmax.f32 %v721, 0.0
      %v754 = vmax.f32 %v722, 0.0
      %v755 = vmax.f32 %v723, 0.0
      %v756 = vmax.f32 %v724, 0.0
      %v757 = vmax.f32 %v725, 0.0
      %v758 = vmax.f32 %v726, 0.0
      %v759 = vmax.f32 %v727, 0.0
      %v760 = vmax.f32 %v728, 0.0
      %v761 = vmax.f32 %v729, 0.0
      %v762 = vmax.f32 %v730, 0.0
      %v763 = vmax.f32 %v731, 0.0
      %v764 = vmax.f32 %v732, 0.0
      %v765 = vmax.f32 %v733, 0.0
      %v766 = vmax.f32 %v734, 0.0
      %v767 = vmax.f32 %v735, 0.0
      %v768 = vmax.f32 %v736, 0.0
      %v769 = vmax.f32 %v737, 0.0
      %v770 = vmax.f32 %v738, 0.0
      %v771 = vmax.f32 %v739, 0.0
      %v772 = vmax.f32 %v740, 0.0
      %v773 = vmax.f32 %v741, 0.0
      %v774 = vpack.c.bf16 %v743, %v742
      %v775 = vpack.c.bf16 %v745, %v744
      %v776 = vpack.c.bf16 %v747, %v746
      %v777 = vpack.c.bf16 %v749, %v748
      %v778 = vpack.c.bf16 %v751, %v750
      %v779 = vpack.c.bf16 %v753, %v752
      %v780 = vpack.c.bf16 %v755, %v754
      %v781 = vpack.c.bf16 %v757, %v756
      %v782 = vpack.c.bf16 %v759, %v758
      %v783 = vpack.c.bf16 %v761, %v760
      %v784 = vpack.c.bf16 %v763, %v762
      %v785 = vpack.c.bf16 %v765, %v764
      %v786 = vpack.c.bf16 %v767, %v766
      %v787 = vpack.c.bf16 %v769, %v768
      %v788 = vpack.c.bf16 %v771, %v770
      %v789 = vpack.c.bf16 %v773, %v772
      %v790 = vld [vmem:[%s4] sm:$0xf]
      %v791 = vld [vmem:[%s4 + $0x4] sm:$0xf]
      %v792 = vld [vmem:[%s4 + $0x8] sm:$0xf]
      %v793 = vld [vmem:[%s4 + $0xc] sm:$0xf]
      %v794 = vld [vmem:[%s4 + $0x10] sm:$0xf]
      %v795 = vld [vmem:[%s4 + $0x14] sm:$0xf]
      %v796 = vld [vmem:[%s4 + $0x18] sm:$0xf]
      %v797 = vld [vmem:[%s4 + $0x1c] sm:$0xf]
      %v798 = vld [vmem:[%s4 + $0x20] sm:$0xf]
      %v799 = vld [vmem:[%s4 + $0x24] sm:$0xf]
      %v800 = vld [vmem:[%s4 + $0x28] sm:$0xf]
      %v801 = vld [vmem:[%s4 + $0x2c] sm:$0xf]
      %v802 = vld [vmem:[%s4 + $0x30] sm:$0xf]
      %v803 = vld [vmem:[%s4 + $0x34] sm:$0xf]
      %v804 = vld [vmem:[%s4 + $0x38] sm:$0xf]
      %v805 = vld [vmem:[%s4 + $0x3c] sm:$0xf]
      %v822 = vunpack.c.l.b16 %v790
      %v823 = vunpack.c.l.b16 %v791
      %v824 = vunpack.c.l.b16 %v792
      %v825 = vunpack.c.l.b16 %v793
      %v826 = vunpack.c.l.b16 %v794
      %v827 = vunpack.c.l.b16 %v795
      %v828 = vunpack.c.l.b16 %v796
      %v829 = vunpack.c.l.b16 %v797
      %v830 = vunpack.c.l.b16 %v798
      %v831 = vunpack.c.l.b16 %v799
      %v832 = vunpack.c.l.b16 %v800
      %v833 = vunpack.c.l.b16 %v801
      %v834 = vunpack.c.l.b16 %v802
      %v835 = vunpack.c.l.b16 %v803
      %v836 = vunpack.c.l.b16 %v804
      %v837 = vunpack.c.l.b16 %v805
      %v838 = vpack.c.b16 %v823, %v822
      %v839 = vpack.c.b16 %v825, %v824
      %v840 = vpack.c.b16 %v827, %v826
      %v841 = vpack.c.b16 %v829, %v828
      %v842 = vpack.c.b16 %v831, %v830
      %v843 = vpack.c.b16 %v833, %v832
      %v844 = vpack.c.b16 %v835, %v834
      %v845 = vpack.c.b16 %v837, %v836
      %854 = vmatprep.subr.bf16.mxu0 0
      %855 = vmatpush1.bf16.msra.mxu0 %v838
      %856 = vmatprep.subr.bf16.mxu0 0
      %857 = vmatpush1.bf16.msra.mxu0 %v839
      %858 = vmatprep.subr.bf16.mxu0 0
      %859 = vmatpush1.bf16.msra.mxu0 %v840
      %860 = vmatprep.subr.bf16.mxu0 0
      %861 = vmatpush1.bf16.msra.mxu0 %v841
      %862 = vmatprep.subr.bf16.mxu0 0
      %863 = vmatpush1.bf16.msra.mxu0 %v842
      %864 = vmatprep.subr.bf16.mxu0 0
      %865 = vmatpush1.bf16.msra.mxu0 %v843
      %866 = vmatprep.subr.bf16.mxu0 0
      %867 = vmatpush1.bf16.msra.mxu0 %v844
      %868 = vmatprep.subr.bf16.mxu0 0
      %869 = vmatpush1.bf16.msra.mxu0 %v845
      %870 = vmatprep.subr.bf16.mxu0 0
      %871 = vmatpush1.bf16.msra.mxu0 0
      %872 = vmatprep.subr.bf16.mxu0 0
      %873 = vmatpush1.bf16.msra.mxu0 0
      %874 = vmatprep.subr.bf16.mxu0 0
      %875 = vmatpush1.bf16.msra.mxu0 0
      %876 = vmatprep.subr.bf16.mxu0 0
      %877 = vmatpush1.bf16.msra.mxu0 0
      %878 = vmatprep.subr.bf16.mxu0 0
      %879 = vmatpush1.bf16.msra.mxu0 0
      %880 = vmatprep.subr.bf16.mxu0 0
      %881 = vmatpush1.bf16.msra.mxu0 0
      %882 = vmatprep.subr.bf16.mxu0 0
      %883 = vmatpush1.bf16.msra.mxu0 0
      %884 = vmatprep.subr.bf16.mxu0 0
      %885 = vmatpush1.bf16.msra.mxu0 0
      %886 = vmatprep.mubr.bf16.mxu0 0
      %887 = vmatmul.mubr.bf16.gmra.mrb[0].mxu0 %v774
      %v888 = vpop.f32.mrb[0].mxu0
      %v889 = vadd.f32 0.0, %v888
      %v890 = vpop.f32.mrb[0].mxu0
      %v891 = vpop.f32.mrb[0].mxu0
      %v892 = vadd.f32 0.0, %v891
      %v893 = vpop.f32.mrb[0].mxu0
      %894 = vmatprep.mubr.bf16.mxu0 0
      %895 = vmatmul.mubr.bf16.gmra.mrb[0].mxu0 %v775
      %v896 = vpop.f32.mrb[0].mxu0
      %v897 = vadd.f32 0.0, %v896
      %v898 = vpop.f32.mrb[0].mxu0
      %v899 = vpop.f32.mrb[0].mxu0
      %v900 = vadd.f32 0.0, %v899
      %v901 = vpop.f32.mrb[0].mxu0
      %902 = vmatprep.mubr.bf16.mxu0 0
      %903 = vmatmul.mubr.bf16.gmra.mrb[0].mxu0 %v776
      %v904 = vpop.f32.mrb[0].mxu0
      %v905 = vadd.f32 0.0, %v904
      %v906 = vpop.f32.mrb[0].mxu0
      %v907 = vpop.f32.mrb[0].mxu0
      %v908 = vadd.f32 0.0, %v907
      %v909 = vpop.f32.mrb[0].mxu0
      %910 = vmatprep.mubr.bf16.mxu0 0
      %911 = vmatmul.mubr.bf16.gmra.mrb[0].mxu0 %v777
      %v912 = vpop.f32.mrb[0].mxu0
      %v913 = vadd.f32 0.0, %v912
      %v914 = vpop.f32.mrb[0].mxu0
      %v915 = vpop.f32.mrb[0].mxu0
      %v916 = vadd.f32 0.0, %v915
      %v917 = vpop.f32.mrb[0].mxu0
      %918 = vmatprep.mubr.bf16.mxu0 0
      %919 = vmatmul.mubr.bf16.gmra.mrb[0].mxu0 %v778
      %v920 = vpop.f32.mrb[0].mxu0
      %v921 = vadd.f32 0.0, %v920
      %v922 = vpop.f32.mrb[0].mxu0
      %v923 = vpop.f32.mrb[0].mxu0
      %v924 = vadd.f32 0.0, %v923
      %v925 = vpop.f32.mrb[0].mxu0
      %926 = vmatprep.mubr.bf16.mxu0 0
      %927 = vmatmul.mubr.bf16.gmra.mrb[0].mxu0 %v779
      %v928 = vpop.f32.mrb[0].mxu0
      %v929 = vadd.f32 0.0, %v928
      %v930 = vpop.f32.mrb[0].mxu0
      %v931 = vpop.f32.mrb[0].mxu0
      %v932 = vadd.f32 0.0, %v931
      %v933 = vpop.f32.mrb[0].mxu0
      %934 = vmatprep.mubr.bf16.mxu0 0
      %935 = vmatmul.mubr.bf16.gmra.mrb[0].mxu0 %v780
      %v936 = vpop.f32.mrb[0].mxu0
      %v937 = vadd.f32 0.0, %v936
      %v938 = vpop.f32.mrb[0].mxu0
      %v939 = vpop.f32.mrb[0].mxu0
      %v940 = vadd.f32 0.0, %v939
      %v941 = vpop.f32.mrb[0].mxu0
      %942 = vmatprep.mubr.bf16.mxu0 0
      %943 = vmatmul.mubr.bf16.gmra.mrb[0].mxu0 %v781
      %v944 = vpop.f32.mrb[0].mxu0
      %v945 = vadd.f32 0.0, %v944
      %v946 = vpop.f32.mrb[0].mxu0
      %v947 = vpop.f32.mrb[0].mxu0
      %v948 = vadd.f32 0.0, %v947
      %v949 = vpop.f32.mrb[0].mxu0
      %950 = vmatprep.mubr.bf16.mxu0 0
      %951 = vmatmul.mubr.bf16.gmra.mrb[0].mxu0 %v782
      %v952 = vpop.f32.mrb[0].mxu0
      %v953 = vadd.f32 0.0, %v952
      %v954 = vpop.f32.mrb[0].mxu0
      %v955 = vpop.f32.mrb[0].mxu0
      %v956 = vadd.f32 0.0, %v955
      %v957 = vpop.f32.mrb[0].mxu0
      %958 = vmatprep.mubr.bf16.mxu0 0
      %959 = vmatmul.mubr.bf16.gmra.mrb[0].mxu0 %v783
      %v960 = vpop.f32.mrb[0].mxu0
      %v961 = vadd.f32 0.0, %v960
      %v962 = vpop.f32.mrb[0].mxu0
      %v963 = vpop.f32.mrb[0].mxu0
      %v964 = vadd.f32 0.0, %v963
      %v965 = vpop.f32.mrb[0].mxu0
      %966 = vmatprep.mubr.bf16.mxu0 0
      %967 = vmatmul.mubr.bf16.gmra.mrb[0].mxu0 %v784
      %v968 = vpop.f32.mrb[0].mxu0
      %v969 = vadd.f32 0.0, %v968
      %v970 = vpop.f32.mrb[0].mxu0
      %v971 = vpop.f32.mrb[0].mxu0
      %v972 = vadd.f32 0.0, %v971
      %v973 = vpop.f32.mrb[0].mxu0
      %974 = vmatprep.mubr.bf16.mxu0 0
      %975 = vmatmul.mubr.bf16.gmra.mrb[0].mxu0 %v785
      %v976 = vpop.f32.mrb[0].mxu0
      %v977 = vadd.f32 0.0, %v976
      %v978 = vpop.f32.mrb[0].mxu0
      %v979 = vpop.f32.mrb[0].mxu0
      %v980 = vadd.f32 0.0, %v979
      %v981 = vpop.f32.mrb[0].mxu0
      %982 = vmatprep.mubr.bf16.mxu0 0
      %983 = vmatmul.mubr.bf16.gmra.mrb[0].mxu0 %v786
      %v984 = vpop.f32.mrb[0].mxu0
      %v985 = vadd.f32 0.0, %v984
      %v986 = vpop.f32.mrb[0].mxu0
      %v987 = vpop.f32.mrb[0].mxu0
      %v988 = vadd.f32 0.0, %v987
      %v989 = vpop.f32.mrb[0].mxu0
      %990 = vmatprep.mubr.bf16.mxu0 0
      %991 = vmatmul.mubr.bf16.gmra.mrb[0].mxu0 %v787
      %v992 = vpop.f32.mrb[0].mxu0
      %v993 = vadd.f32 0.0, %v992
      %v994 = vpop.f32.mrb[0].mxu0
      %v995 = vpop.f32.mrb[0].mxu0
      %v996 = vadd.f32 0.0, %v995
      %v997 = vpop.f32.mrb[0].mxu0
      %998 = vmatprep.mubr.bf16.mxu0 0
      %999 = vmatmul.mubr.bf16.gmra.mrb[0].mxu0 %v788
      %v1000 = vpop.f32.mrb[0].mxu0
      %v1001 = vadd.f32 0.0, %v1000
      %v1002 = vpop.f32.mrb[0].mxu0
      %v1003 = vpop.f32.mrb[0].mxu0
      %v1004 = vadd.f32 0.0, %v1003
      %v1005 = vpop.f32.mrb[0].mxu0
      %1006 = vmatprep.mubr.bf16.mxu0 0
      %1007 = vmatmul.mubr.bf16.gmra.mrb[0].mxu0 %v789
      %v1008 = vpop.f32.mrb[0].mxu0
      %v1009 = vadd.f32 0.0, %v1008
      %v1010 = vpop.f32.mrb[0].mxu0
      %v1011 = vpop.f32.mrb[0].mxu0
      %v1012 = vadd.f32 0.0, %v1011
      %v1013 = vpop.f32.mrb[0].mxu0
      %1014 = vdwg.mxu0
      %v1015 = vld [vmem:[%s5] sm:$0x1]
      %v1017 = vlaneseq
      %v1018 = vshrl.u32 %v1017, 7
      %v1019 = vsub.s32 0, %v1018
      %v1020 = vrot.slane %v1015, %v1019
      %v1022 = vmul.f32 %v889, %v1020
      %v1023 = vmul.f32 %v892, %v1020
      %v1024 = vmul.f32 %v897, %v1020
      %v1025 = vmul.f32 %v900, %v1020
      %v1026 = vmul.f32 %v905, %v1020
      %v1027 = vmul.f32 %v908, %v1020
      %v1028 = vmul.f32 %v913, %v1020
      %v1029 = vmul.f32 %v916, %v1020
      %v1030 = vmul.f32 %v921, %v1020
      %v1031 = vmul.f32 %v924, %v1020
      %v1032 = vmul.f32 %v929, %v1020
      %v1033 = vmul.f32 %v932, %v1020
      %v1034 = vmul.f32 %v937, %v1020
      %v1035 = vmul.f32 %v940, %v1020
      %v1036 = vmul.f32 %v945, %v1020
      %v1037 = vmul.f32 %v948, %v1020
      %v1038 = vmul.f32 %v953, %v1020
      %v1039 = vmul.f32 %v956, %v1020
      %v1040 = vmul.f32 %v961, %v1020
      %v1041 = vmul.f32 %v964, %v1020
      %v1042 = vmul.f32 %v969, %v1020
      %v1043 = vmul.f32 %v972, %v1020
      %v1044 = vmul.f32 %v977, %v1020
      %v1045 = vmul.f32 %v980, %v1020
      %v1046 = vmul.f32 %v985, %v1020
      %v1047 = vmul.f32 %v988, %v1020
      %v1048 = vmul.f32 %v993, %v1020
      %v1049 = vmul.f32 %v996, %v1020
      %v1050 = vmul.f32 %v1001, %v1020
      %v1051 = vmul.f32 %v1004, %v1020
      %v1052 = vmul.f32 %v1009, %v1020
      %v1053 = vmul.f32 %v1012, %v1020
      %v1054 = vld [vmem:[%s6] sm:$0x1]
      %v1056 = vlaneseq
      %v1057 = vshrl.u32 %v1056, 7
      %v1058 = vsub.s32 0, %v1057
      %v1059 = vrot.slane %v1054, %v1058
      %v1061 = vadd.f32 %v1022, %v1059
      %v1062 = vadd.f32 %v1023, %v1059
      %v1063 = vadd.f32 %v1024, %v1059
      %v1064 = vadd.f32 %v1025, %v1059
      %v1065 = vadd.f32 %v1026, %v1059
      %v1066 = vadd.f32 %v1027, %v1059
      %v1067 = vadd.f32 %v1028, %v1059
      %v1068 = vadd.f32 %v1029, %v1059
      %v1069 = vadd.f32 %v1030, %v1059
      %v1070 = vadd.f32 %v1031, %v1059
      %v1071 = vadd.f32 %v1032, %v1059
      %v1072 = vadd.f32 %v1033, %v1059
      %v1073 = vadd.f32 %v1034, %v1059
      %v1074 = vadd.f32 %v1035, %v1059
      %v1075 = vadd.f32 %v1036, %v1059
      %v1076 = vadd.f32 %v1037, %v1059
      %v1077 = vadd.f32 %v1038, %v1059
      %v1078 = vadd.f32 %v1039, %v1059
      %v1079 = vadd.f32 %v1040, %v1059
      %v1080 = vadd.f32 %v1041, %v1059
      %v1081 = vadd.f32 %v1042, %v1059
      %v1082 = vadd.f32 %v1043, %v1059
      %v1083 = vadd.f32 %v1044, %v1059
      %v1084 = vadd.f32 %v1045, %v1059
      %v1085 = vadd.f32 %v1046, %v1059
      %v1086 = vadd.f32 %v1047, %v1059
      %v1087 = vadd.f32 %v1048, %v1059
      %v1088 = vadd.f32 %v1049, %v1059
      %v1089 = vadd.f32 %v1050, %v1059
      %v1090 = vadd.f32 %v1051, %v1059
      %v1091 = vadd.f32 %v1052, %v1059
      %v1092 = vadd.f32 %v1053, %v1059
      %v1093 = vmax.f32 %v1061, 0.0
      %v1094 = vmax.f32 %v1062, 0.0
      %v1095 = vmax.f32 %v1063, 0.0
      %v1096 = vmax.f32 %v1064, 0.0
      %v1097 = vmax.f32 %v1065, 0.0
      %v1098 = vmax.f32 %v1066, 0.0
      %v1099 = vmax.f32 %v1067, 0.0
      %v1100 = vmax.f32 %v1068, 0.0
      %v1101 = vmax.f32 %v1069, 0.0
      %v1102 = vmax.f32 %v1070, 0.0
      %v1103 = vmax.f32 %v1071, 0.0
      %v1104 = vmax.f32 %v1072, 0.0
      %v1105 = vmax.f32 %v1073, 0.0
      %v1106 = vmax.f32 %v1074, 0.0
      %v1107 = vmax.f32 %v1075, 0.0
      %v1108 = vmax.f32 %v1076, 0.0
      %v1109 = vmax.f32 %v1077, 0.0
      %v1110 = vmax.f32 %v1078, 0.0
      %v1111 = vmax.f32 %v1079, 0.0
      %v1112 = vmax.f32 %v1080, 0.0
      %v1113 = vmax.f32 %v1081, 0.0
      %v1114 = vmax.f32 %v1082, 0.0
      %v1115 = vmax.f32 %v1083, 0.0
      %v1116 = vmax.f32 %v1084, 0.0
      %v1117 = vmax.f32 %v1085, 0.0
      %v1118 = vmax.f32 %v1086, 0.0
      %v1119 = vmax.f32 %v1087, 0.0
      %v1120 = vmax.f32 %v1088, 0.0
      %v1121 = vmax.f32 %v1089, 0.0
      %v1122 = vmax.f32 %v1090, 0.0
      %v1123 = vmax.f32 %v1091, 0.0
      %v1124 = vmax.f32 %v1092, 0.0
      %v1125 = vpack.c.bf16 %v1094, %v1093
      %v1126 = vpack.c.bf16 %v1096, %v1095
      %v1127 = vpack.c.bf16 %v1098, %v1097
      %v1128 = vpack.c.bf16 %v1100, %v1099
      %v1129 = vpack.c.bf16 %v1102, %v1101
      %v1130 = vpack.c.bf16 %v1104, %v1103
      %v1131 = vpack.c.bf16 %v1106, %v1105
      %v1132 = vpack.c.bf16 %v1108, %v1107
      %v1133 = vpack.c.bf16 %v1110, %v1109
      %v1134 = vpack.c.bf16 %v1112, %v1111
      %v1135 = vpack.c.bf16 %v1114, %v1113
      %v1136 = vpack.c.bf16 %v1116, %v1115
      %v1137 = vpack.c.bf16 %v1118, %v1117
      %v1138 = vpack.c.bf16 %v1120, %v1119
      %v1139 = vpack.c.bf16 %v1122, %v1121
      %v1140 = vpack.c.bf16 %v1124, %v1123
      %v1141 = vld [vmem:[%s7] sm:$0xff]
      %v1142 = vld [vmem:[%s7 + $0x8] sm:$0xff]
      %v1143 = vld [vmem:[%s7 + $0x10] sm:$0xff]
      %v1144 = vld [vmem:[%s7 + $0x18] sm:$0xff]
      %v1145 = vld [vmem:[%s7 + $0x20] sm:$0xff]
      %v1146 = vld [vmem:[%s7 + $0x28] sm:$0xff]
      %v1147 = vld [vmem:[%s7 + $0x30] sm:$0xff]
      %v1148 = vld [vmem:[%s7 + $0x38] sm:$0xff]
      %v1149 = vld [vmem:[%s7 + $0x40] sm:$0xff]
      %v1150 = vld [vmem:[%s7 + $0x48] sm:$0xff]
      %v1151 = vld [vmem:[%s7 + $0x50] sm:$0xff]
      %v1152 = vld [vmem:[%s7 + $0x58] sm:$0xff]
      %v1153 = vld [vmem:[%s7 + $0x60] sm:$0xff]
      %v1154 = vld [vmem:[%s7 + $0x68] sm:$0xff]
      %v1155 = vld [vmem:[%s7 + $0x70] sm:$0xff]
      %v1156 = vld [vmem:[%s7 + $0x78] sm:$0xff]
      %v1157 = vld [vmem:[%s8] sm:$0x3]
      %v1159 = vlaneseq
      %v1160 = vshrl.u32 %v1159, 7
      %v1161 = vsub.s32 0, %v1160
      %v1162 = vrot.slane %v1157, %v1161
      %v1163 = vlaneseq
      %v1164 = vshrl.u32 %v1163, 7
      %v1165 = vsub.s32 1, %v1164
      %v1166 = vrot.slane %v1157, %v1165
      %v1185 = vunpack.c.l.b16 %v1141
      %v1186 = vunpack.c.h.b16 %v1141
      %v1187 = vunpack.c.l.b16 %v1142
      %v1188 = vunpack.c.h.b16 %v1142
      %v1189 = vunpack.c.l.b16 %v1143
      %v1190 = vunpack.c.h.b16 %v1143
      %v1191 = vunpack.c.l.b16 %v1144
      %v1192 = vunpack.c.h.b16 %v1144
      %v1193 = vunpack.c.l.b16 %v1145
      %v1194 = vunpack.c.h.b16 %v1145
      %v1195 = vunpack.c.l.b16 %v1146
      %v1196 = vunpack.c.h.b16 %v1146
      %v1197 = vunpack.c.l.b16 %v1147
      %v1198 = vunpack.c.h.b16 %v1147
      %v1199 = vunpack.c.l.b16 %v1148
      %v1200 = vunpack.c.h.b16 %v1148
      %v1201 = vunpack.c.l.b16 %v1149
      %v1202 = vunpack.c.h.b16 %v1149
      %v1203 = vunpack.c.l.b16 %v1150
      %v1204 = vunpack.c.h.b16 %v1150
      %v1205 = vunpack.c.l.b16 %v1151
      %v1206 = vunpack.c.h.b16 %v1151
      %v1207 = vunpack.c.l.b16 %v1152
      %v1208 = vunpack.c.h.b16 %v1152
      %v1209 = vunpack.c.l.b16 %v1153
      %v1210 = vunpack.c.h.b16 %v1153
      %v1211 = vunpack.c.l.b16 %v1154
      %v1212 = vunpack.c.h.b16 %v1154
      %v1213 = vunpack.c.l.b16 %v1155
      %v1214 = vunpack.c.h.b16 %v1155
      %v1215 = vunpack.c.l.b16 %v1156
      %v1216 = vunpack.c.h.b16 %v1156
      %v1217 = vpack.c.b16 %v1187, %v1185
      %v1218 = vpack.c.b16 %v1188, %v1186
      %v1219 = vpack.c.b16 %v1191, %v1189
      %v1220 = vpack.c.b16 %v1192, %v1190
      %v1221 = vpack.c.b16 %v1195, %v1193
      %v1222 = vpack.c.b16 %v1196, %v1194
      %v1223 = vpack.c.b16 %v1199, %v1197
      %v1224 = vpack.c.b16 %v1200, %v1198
      %v1225 = vpack.c.b16 %v1203, %v1201
      %v1226 = vpack.c.b16 %v1204, %v1202
      %v1227 = vpack.c.b16 %v1207, %v1205
      %v1228 = vpack.c.b16 %v1208, %v1206
      %v1229 = vpack.c.b16 %v1211, %v1209
      %v1230 = vpack.c.b16 %v1212, %v1210
      %v1231 = vpack.c.b16 %v1215, %v1213
      %v1232 = vpack.c.b16 %v1216, %v1214
      %1249 = vmatprep.subr.bf16.mxu0 %v1218
      %1250 = vmatpush1.bf16.msra.mxu0 %v1217
      %1251 = vmatprep.subr.bf16.mxu0 %v1220
      %1252 = vmatpush1.bf16.msra.mxu0 %v1219
      %1253 = vmatprep.subr.bf16.mxu0 %v1222
      %1254 = vmatpush1.bf16.msra.mxu0 %v1221
      %1255 = vmatprep.subr.bf16.mxu0 %v1224
      %1256 = vmatpush1.bf16.msra.mxu0 %v1223
      %1257 = vmatprep.subr.bf16.mxu0 %v1226
      %1258 = vmatpush1.bf16.msra.mxu0 %v1225
      %1259 = vmatprep.subr.bf16.mxu0 %v1228
      %1260 = vmatpush1.bf16.msra.mxu0 %v1227
      %1261 = vmatprep.subr.bf16.mxu0 %v1230
      %1262 = vmatpush1.bf16.msra.mxu0 %v1229
      %1263 = vmatprep.subr.bf16.mxu0 %v1232
      %1264 = vmatpush1.bf16.msra.mxu0 %v1231
      %1265 = vmatprep.subr.bf16.mxu0 0
      %1266 = vmatpush1.bf16.msra.mxu0 0
      %1267 = vmatprep.subr.bf16.mxu0 0
      %1268 = vmatpush1.bf16.msra.mxu0 0
      %1269 = vmatprep.subr.bf16.mxu0 0
      %1270 = vmatpush1.bf16.msra.mxu0 0
      %1271 = vmatprep.subr.bf16.mxu0 0
      %1272 = vmatpush1.bf16.msra.mxu0 0
      %1273 = vmatprep.subr.bf16.mxu0 0
      %1274 = vmatpush1.bf16.msra.mxu0 0
      %1275 = vmatprep.subr.bf16.mxu0 0
      %1276 = vmatpush1.bf16.msra.mxu0 0
      %1277 = vmatprep.subr.bf16.mxu0 0
      %1278 = vmatpush1.bf16.msra.mxu0 0
      %1279 = vmatprep.subr.bf16.mxu0 0
      %1280 = vmatpush1.bf16.msra.mxu0 0
      %1281 = vmatprep.mubr.bf16.mxu0 0
      %1282 = vmatmul.mubr.bf16.gmra.mrb[0].mxu0 %v1125
      %v1283 = vpop.f32.mrb[0].mxu0
      %v1284 = vadd.f32 %v1162, %v1283
      %v1285 = vpop.f32.mrb[0].mxu0
      %v1286 = vadd.f32 %v1166, %v1285
      %v1287 = vpop.f32.mrb[0].mxu0
      %v1288 = vadd.f32 %v1162, %v1287
      %v1289 = vpop.f32.mrb[0].mxu0
      %v1290 = vadd.f32 %v1166, %v1289
      %1291 = vmatprep.mubr.bf16.mxu0 0
      %1292 = vmatmul.mubr.bf16.gmra.mrb[0].mxu0 %v1126
      %v1293 = vpop.f32.mrb[0].mxu0
      %v1294 = vadd.f32 %v1162, %v1293
      %v1295 = vpop.f32.mrb[0].mxu0
      %v1296 = vadd.f32 %v1166, %v1295
      %v1297 = vpop.f32.mrb[0].mxu0
      %v1298 = vadd.f32 %v1162, %v1297
      %v1299 = vpop.f32.mrb[0].mxu0
      %v1300 = vadd.f32 %v1166, %v1299
      %1301 = vmatprep.mubr.bf16.mxu0 0
      %1302 = vmatmul.mubr.bf16.gmra.mrb[0].mxu0 %v1127
      %v1303 = vpop.f32.mrb[0].mxu0
      %v1304 = vadd.f32 %v1162, %v1303
      %v1305 = vpop.f32.mrb[0].mxu0
      %v1306 = vadd.f32 %v1166, %v1305
      %v1307 = vpop.f32.mrb[0].mxu0
      %v1308 = vadd.f32 %v1162, %v1307
      %v1309 = vpop.f32.mrb[0].mxu0
      %v1310 = vadd.f32 %v1166, %v1309
      %1311 = vmatprep.mubr.bf16.mxu0 0
      %1312 = vmatmul.mubr.bf16.gmra.mrb[0].mxu0 %v1128
      %v1313 = vpop.f32.mrb[0].mxu0
      %v1314 = vadd.f32 %v1162, %v1313
      %v1315 = vpop.f32.mrb[0].mxu0
      %v1316 = vadd.f32 %v1166, %v1315
      %v1317 = vpop.f32.mrb[0].mxu0
      %v1318 = vadd.f32 %v1162, %v1317
      %v1319 = vpop.f32.mrb[0].mxu0
      %v1320 = vadd.f32 %v1166, %v1319
      %1321 = vmatprep.mubr.bf16.mxu0 0
      %1322 = vmatmul.mubr.bf16.gmra.mrb[0].mxu0 %v1129
      %v1323 = vpop.f32.mrb[0].mxu0
      %v1324 = vadd.f32 %v1162, %v1323
      %v1325 = vpop.f32.mrb[0].mxu0
      %v1326 = vadd.f32 %v1166, %v1325
      %v1327 = vpop.f32.mrb[0].mxu0
      %v1328 = vadd.f32 %v1162, %v1327
      %v1329 = vpop.f32.mrb[0].mxu0
      %v1330 = vadd.f32 %v1166, %v1329
      %1331 = vmatprep.mubr.bf16.mxu0 0
      %1332 = vmatmul.mubr.bf16.gmra.mrb[0].mxu0 %v1130
      %v1333 = vpop.f32.mrb[0].mxu0
      %v1334 = vadd.f32 %v1162, %v1333
      %v1335 = vpop.f32.mrb[0].mxu0
      %v1336 = vadd.f32 %v1166, %v1335
      %v1337 = vpop.f32.mrb[0].mxu0
      %v1338 = vadd.f32 %v1162, %v1337
      %v1339 = vpop.f32.mrb[0].mxu0
      %v1340 = vadd.f32 %v1166, %v1339
      %1341 = vmatprep.mubr.bf16.mxu0 0
      %1342 = vmatmul.mubr.bf16.gmra.mrb[0].mxu0 %v1131
      %v1343 = vpop.f32.mrb[0].mxu0
      %v1344 = vadd.f32 %v1162, %v1343
      %v1345 = vpop.f32.mrb[0].mxu0
      %v1346 = vadd.f32 %v1166, %v1345
      %v1347 = vpop.f32.mrb[0].mxu0
      %v1348 = vadd.f32 %v1162, %v1347
      %v1349 = vpop.f32.mrb[0].mxu0
      %v1350 = vadd.f32 %v1166, %v1349
      %1351 = vmatprep.mubr.bf16.mxu0 0
      %1352 = vmatmul.mubr.bf16.gmra.mrb[0].mxu0 %v1132
      %v1353 = vpop.f32.mrb[0].mxu0
      %v1354 = vadd.f32 %v1162, %v1353
      %v1355 = vpop.f32.mrb[0].mxu0
      %v1356 = vadd.f32 %v1166, %v1355
      %v1357 = vpop.f32.mrb[0].mxu0
      %v1358 = vadd.f32 %v1162, %v1357
      %v1359 = vpop.f32.mrb[0].mxu0
      %v1360 = vadd.f32 %v1166, %v1359
      %1361 = vmatprep.mubr.bf16.mxu0 0
      %1362 = vmatmul.mubr.bf16.gmra.mrb[0].mxu0 %v1133
      %v1363 = vpop.f32.mrb[0].mxu0
      %v1364 = vadd.f32 %v1162, %v1363
      %v1365 = vpop.f32.mrb[0].mxu0
      %v1366 = vadd.f32 %v1166, %v1365
      %v1367 = vpop.f32.mrb[0].mxu0
      %v1368 = vadd.f32 %v1162, %v1367
      %v1369 = vpop.f32.mrb[0].mxu0
      %v1370 = vadd.f32 %v1166, %v1369
      %1371 = vmatprep.mubr.bf16.mxu0 0
      %1372 = vmatmul.mubr.bf16.gmra.mrb[0].mxu0 %v1134
      %v1373 = vpop.f32.mrb[0].mxu0
      %v1374 = vadd.f32 %v1162, %v1373
      %v1375 = vpop.f32.mrb[0].mxu0
      %v1376 = vadd.f32 %v1166, %v1375
      %v1377 = vpop.f32.mrb[0].mxu0
      %v1378 = vadd.f32 %v1162, %v1377
      %v1379 = vpop.f32.mrb[0].mxu0
      %v1380 = vadd.f32 %v1166, %v1379
      %1381 = vmatprep.mubr.bf16.mxu0 0
      %1382 = vmatmul.mubr.bf16.gmra.mrb[0].mxu0 %v1135
      %v1383 = vpop.f32.mrb[0].mxu0
      %v1384 = vadd.f32 %v1162, %v1383
      %v1385 = vpop.f32.mrb[0].mxu0
      %v1386 = vadd.f32 %v1166, %v1385
      %v1387 = vpop.f32.mrb[0].mxu0
      %v1388 = vadd.f32 %v1162, %v1387
      %v1389 = vpop.f32.mrb[0].mxu0
      %v1390 = vadd.f32 %v1166, %v1389
      %1391 = vmatprep.mubr.bf16.mxu0 0
      %1392 = vmatmul.mubr.bf16.gmra.mrb[0].mxu0 %v1136
      %v1393 = vpop.f32.mrb[0].mxu0
      %v1394 = vadd.f32 %v1162, %v1393
      %v1395 = vpop.f32.mrb[0].mxu0
      %v1396 = vadd.f32 %v1166, %v1395
      %v1397 = vpop.f32.mrb[0].mxu0
      %v1398 = vadd.f32 %v1162, %v1397
      %v1399 = vpop.f32.mrb[0].mxu0
      %v1400 = vadd.f32 %v1166, %v1399
      %1401 = vmatprep.mubr.bf16.mxu0 0
      %1402 = vmatmul.mubr.bf16.gmra.mrb[0].mxu0 %v1137
      %v1403 = vpop.f32.mrb[0].mxu0
      %v1404 = vadd.f32 %v1162, %v1403
      %v1405 = vpop.f32.mrb[0].mxu0
      %v1406 = vadd.f32 %v1166, %v1405
      %v1407 = vpop.f32.mrb[0].mxu0
      %v1408 = vadd.f32 %v1162, %v1407
      %v1409 = vpop.f32.mrb[0].mxu0
      %v1410 = vadd.f32 %v1166, %v1409
      %1411 = vmatprep.mubr.bf16.mxu0 0
      %1412 = vmatmul.mubr.bf16.gmra.mrb[0].mxu0 %v1138
      %v1413 = vpop.f32.mrb[0].mxu0
      %v1414 = vadd.f32 %v1162, %v1413
      %v1415 = vpop.f32.mrb[0].mxu0
      %v1416 = vadd.f32 %v1166, %v1415
      %v1417 = vpop.f32.mrb[0].mxu0
      %v1418 = vadd.f32 %v1162, %v1417
      %v1419 = vpop.f32.mrb[0].mxu0
      %v1420 = vadd.f32 %v1166, %v1419
      %1421 = vmatprep.mubr.bf16.mxu0 0
      %1422 = vmatmul.mubr.bf16.gmra.mrb[0].mxu0 %v1139
      %v1423 = vpop.f32.mrb[0].mxu0
      %v1424 = vadd.f32 %v1162, %v1423
      %v1425 = vpop.f32.mrb[0].mxu0
      %v1426 = vadd.f32 %v1166, %v1425
      %v1427 = vpop.f32.mrb[0].mxu0
      %v1428 = vadd.f32 %v1162, %v1427
      %v1429 = vpop.f32.mrb[0].mxu0
      %v1430 = vadd.f32 %v1166, %v1429
      %1431 = vmatprep.mubr.bf16.mxu0 0
      %1432 = vmatmul.mubr.bf16.gmra.mrb[0].mxu0 %v1140
      %v1433 = vpop.f32.mrb[0].mxu0
      %v1434 = vadd.f32 %v1162, %v1433
      %v1435 = vpop.f32.mrb[0].mxu0
      %v1436 = vadd.f32 %v1166, %v1435
      %v1437 = vpop.f32.mrb[0].mxu0
      %v1438 = vadd.f32 %v1162, %v1437
      %v1439 = vpop.f32.mrb[0].mxu0
      %v1440 = vadd.f32 %v1166, %v1439
      %1441 = vdwg.mxu0
      %v1442 = vmax.f32 %v1286, 0.0
      %v1443 = vmax.f32 %v1290, 0.0
      %v1444 = vmax.f32 %v1296, 0.0
      %v1445 = vmax.f32 %v1300, 0.0
      %v1446 = vmax.f32 %v1306, 0.0
      %v1447 = vmax.f32 %v1310, 0.0
      %v1448 = vmax.f32 %v1316, 0.0
      %v1449 = vmax.f32 %v1320, 0.0
      %v1450 = vmax.f32 %v1326, 0.0
      %v1451 = vmax.f32 %v1330, 0.0
      %v1452 = vmax.f32 %v1336, 0.0
      %v1453 = vmax.f32 %v1340, 0.0
      %v1454 = vmax.f32 %v1346, 0.0
      %v1455 = vmax.f32 %v1350, 0.0
      %v1456 = vmax.f32 %v1356, 0.0
      %v1457 = vmax.f32 %v1360, 0.0
      %v1458 = vmax.f32 %v1366, 0.0
      %v1459 = vmax.f32 %v1370, 0.0
      %v1460 = vmax.f32 %v1376, 0.0
      %v1461 = vmax.f32 %v1380, 0.0
      %v1462 = vmax.f32 %v1386, 0.0
      %v1463 = vmax.f32 %v1390, 0.0
      %v1464 = vmax.f32 %v1396, 0.0
      %v1465 = vmax.f32 %v1400, 0.0
      %v1466 = vmax.f32 %v1406, 0.0
      %v1467 = vmax.f32 %v1410, 0.0
      %v1468 = vmax.f32 %v1416, 0.0
      %v1469 = vmax.f32 %v1420, 0.0
      %v1470 = vmax.f32 %v1426, 0.0
      %v1471 = vmax.f32 %v1430, 0.0
      %v1472 = vmax.f32 %v1436, 0.0
      %v1473 = vmax.f32 %v1440, 0.0
      %v1474 = vpack.c.bf16 %v1443, %v1442
      %v1475 = vpack.c.bf16 %v1445, %v1444
      %v1476 = vpack.c.bf16 %v1447, %v1446
      %v1477 = vpack.c.bf16 %v1449, %v1448
      %v1478 = vpack.c.bf16 %v1451, %v1450
      %v1479 = vpack.c.bf16 %v1453, %v1452
      %v1480 = vpack.c.bf16 %v1455, %v1454
      %v1481 = vpack.c.bf16 %v1457, %v1456
      %v1482 = vpack.c.bf16 %v1459, %v1458
      %v1483 = vpack.c.bf16 %v1461, %v1460
      %v1484 = vpack.c.bf16 %v1463, %v1462
      %v1485 = vpack.c.bf16 %v1465, %v1464
      %v1486 = vpack.c.bf16 %v1467, %v1466
      %v1487 = vpack.c.bf16 %v1469, %v1468
      %v1488 = vpack.c.bf16 %v1471, %v1470
      %v1489 = vpack.c.bf16 %v1473, %v1472
      %v1490 = vld [vmem:[%s9] sm:$0xf]
      %v1491 = vld [vmem:[%s9 + $0x4] sm:$0xf]
      %v1492 = vld [vmem:[%s9 + $0x8] sm:$0xf]
      %v1493 = vld [vmem:[%s9 + $0xc] sm:$0xf]
      %v1494 = vld [vmem:[%s9 + $0x10] sm:$0xf]
      %v1495 = vld [vmem:[%s9 + $0x14] sm:$0xf]
      %v1496 = vld [vmem:[%s9 + $0x18] sm:$0xf]
      %v1497 = vld [vmem:[%s9 + $0x1c] sm:$0xf]
      %v1498 = vld [vmem:[%s9 + $0x20] sm:$0xf]
      %v1499 = vld [vmem:[%s9 + $0x24] sm:$0xf]
      %v1500 = vld [vmem:[%s9 + $0x28] sm:$0xf]
      %v1501 = vld [vmem:[%s9 + $0x2c] sm:$0xf]
      %v1502 = vld [vmem:[%s9 + $0x30] sm:$0xf]
      %v1503 = vld [vmem:[%s9 + $0x34] sm:$0xf]
      %v1504 = vld [vmem:[%s9 + $0x38] sm:$0xf]
      %v1505 = vld [vmem:[%s9 + $0x3c] sm:$0xf]
      %v1506 = vld [vmem:[%s10] sm:$0x1]
      %v1508 = vlaneseq
      %v1509 = vshrl.u32 %v1508, 7
      %v1510 = vsub.s32 0, %v1509
      %v1511 = vrot.slane %v1506, %v1510
      %v1529 = vunpack.c.l.b16 %v1490
      %v1530 = vunpack.c.l.b16 %v1491
      %v1531 = vunpack.c.l.b16 %v1492
      %v1532 = vunpack.c.l.b16 %v1493
      %v1533 = vunpack.c.l.b16 %v1494
      %v1534 = vunpack.c.l.b16 %v1495
      %v1535 = vunpack.c.l.b16 %v1496
      %v1536 = vunpack.c.l.b16 %v1497
      %v1537 = vunpack.c.l.b16 %v1498
      %v1538 = vunpack.c.l.b16 %v1499
      %v1539 = vunpack.c.l.b16 %v1500
      %v1540 = vunpack.c.l.b16 %v1501
      %v1541 = vunpack.c.l.b16 %v1502
      %v1542 = vunpack.c.l.b16 %v1503
      %v1543 = vunpack.c.l.b16 %v1504
      %v1544 = vunpack.c.l.b16 %v1505
      %v1545 = vpack.c.b16 %v1530, %v1529
      %v1546 = vpack.c.b16 %v1532, %v1531
      %v1547 = vpack.c.b16 %v1534, %v1533
      %v1548 = vpack.c.b16 %v1536, %v1535
      %v1549 = vpack.c.b16 %v1538, %v1537
      %v1550 = vpack.c.b16 %v1540, %v1539
      %v1551 = vpack.c.b16 %v1542, %v1541
      %v1552 = vpack.c.b16 %v1544, %v1543
      %1561 = vmatprep.subr.bf16.mxu0 0
      %1562 = vmatpush1.bf16.msra.mxu0 %v1545
      %1563 = vmatprep.subr.bf16.mxu0 0
      %1564 = vmatpush1.bf16.msra.mxu0 %v1546
      %1565 = vmatprep.subr.bf16.mxu0 0
      %1566 = vmatpush1.bf16.msra.mxu0 %v1547
      %1567 = vmatprep.subr.bf16.mxu0 0
      %1568 = vmatpush1.bf16.msra.mxu0 %v1548
      %1569 = vmatprep.subr.bf16.mxu0 0
      %1570 = vmatpush1.bf16.msra.mxu0 %v1549
      %1571 = vmatprep.subr.bf16.mxu0 0
      %1572 = vmatpush1.bf16.msra.mxu0 %v1550
      %1573 = vmatprep.subr.bf16.mxu0 0
      %1574 = vmatpush1.bf16.msra.mxu0 %v1551
      %1575 = vmatprep.subr.bf16.mxu0 0
      %1576 = vmatpush1.bf16.msra.mxu0 %v1552
      %1577 = vmatprep.subr.bf16.mxu0 0
      %1578 = vmatpush1.bf16.msra.mxu0 0
      %1579 = vmatprep.subr.bf16.mxu0 0
      %1580 = vmatpush1.bf16.msra.mxu0 0
      %1581 = vmatprep.subr.bf16.mxu0 0
      %1582 = vmatpush1.bf16.msra.mxu0 0
      %1583 = vmatprep.subr.bf16.mxu0 0
      %1584 = vmatpush1.bf16.msra.mxu0 0
      %1585 = vmatprep.subr.bf16.mxu0 0
      %1586 = vmatpush1.bf16.msra.mxu0 0
      %1587 = vmatprep.subr.bf16.mxu0 0
      %1588 = vmatpush1.bf16.msra.mxu0 0
      %1589 = vmatprep.subr.bf16.mxu0 0
      %1590 = vmatpush1.bf16.msra.mxu0 0
      %1591 = vmatprep.subr.bf16.mxu0 0
      %1592 = vmatpush1.bf16.msra.mxu0 0
      %1593 = vmatprep.mubr.bf16.mxu0 0
      %1594 = vmatmul.mubr.bf16.gmra.mrb[0].mxu0 %v1474
      %v1595 = vpop.f32.mrb[0].mxu0
      %v1596 = vadd.f32 %v1511, %v1595
      %v1597 = vpop.f32.mrb[0].mxu0
      %v1598 = vpop.f32.mrb[0].mxu0
      %v1599 = vadd.f32 %v1511, %v1598
      %v1600 = vpop.f32.mrb[0].mxu0
      %1601 = vmatprep.mubr.bf16.mxu0 0
      %1602 = vmatmul.mubr.bf16.gmra.mrb[0].mxu0 %v1475
      %v1603 = vpop.f32.mrb[0].mxu0
      %v1604 = vadd.f32 %v1511, %v1603
      %v1605 = vpop.f32.mrb[0].mxu0
      %v1606 = vpop.f32.mrb[0].mxu0
      %v1607 = vadd.f32 %v1511, %v1606
      %v1608 = vpop.f32.mrb[0].mxu0
      %1609 = vmatprep.mubr.bf16.mxu0 0
      %1610 = vmatmul.mubr.bf16.gmra.mrb[0].mxu0 %v1476
      %v1611 = vpop.f32.mrb[0].mxu0
      %v1612 = vadd.f32 %v1511, %v1611
      %v1613 = vpop.f32.mrb[0].mxu0
      %v1614 = vpop.f32.mrb[0].mxu0
      %v1615 = vadd.f32 %v1511, %v1614
      %v1616 = vpop.f32.mrb[0].mxu0
      %1617 = vmatprep.mubr.bf16.mxu0 0
      %1618 = vmatmul.mubr.bf16.gmra.mrb[0].mxu0 %v1477
      %v1619 = vpop.f32.mrb[0].mxu0
      %v1620 = vadd.f32 %v1511, %v1619
      %v1621 = vpop.f32.mrb[0].mxu0
      %v1622 = vpop.f32.mrb[0].mxu0
      %v1623 = vadd.f32 %v1511, %v1622
      %v1624 = vpop.f32.mrb[0].mxu0
      %1625 = vmatprep.mubr.bf16.mxu0 0
      %1626 = vmatmul.mubr.bf16.gmra.mrb[0].mxu0 %v1478
      %v1627 = vpop.f32.mrb[0].mxu0
      %v1628 = vadd.f32 %v1511, %v1627
      %v1629 = vpop.f32.mrb[0].mxu0
      %v1630 = vpop.f32.mrb[0].mxu0
      %v1631 = vadd.f32 %v1511, %v1630
      %v1632 = vpop.f32.mrb[0].mxu0
      %1633 = vmatprep.mubr.bf16.mxu0 0
      %1634 = vmatmul.mubr.bf16.gmra.mrb[0].mxu0 %v1479
      %v1635 = vpop.f32.mrb[0].mxu0
      %v1636 = vadd.f32 %v1511, %v1635
      %v1637 = vpop.f32.mrb[0].mxu0
      %v1638 = vpop.f32.mrb[0].mxu0
      %v1639 = vadd.f32 %v1511, %v1638
      %v1640 = vpop.f32.mrb[0].mxu0
      %1641 = vmatprep.mubr.bf16.mxu0 0
      %1642 = vmatmul.mubr.bf16.gmra.mrb[0].mxu0 %v1480
      %v1643 = vpop.f32.mrb[0].mxu0
      %v1644 = vadd.f32 %v1511, %v1643
      %v1645 = vpop.f32.mrb[0].mxu0
      %v1646 = vpop.f32.mrb[0].mxu0
      %v1647 = vadd.f32 %v1511, %v1646
      %v1648 = vpop.f32.mrb[0].mxu0
      %1649 = vmatprep.mubr.bf16.mxu0 0
      %1650 = vmatmul.mubr.bf16.gmra.mrb[0].mxu0 %v1481
      %v1651 = vpop.f32.mrb[0].mxu0
      %v1652 = vadd.f32 %v1511, %v1651
      %v1653 = vpop.f32.mrb[0].mxu0
      %v1654 = vpop.f32.mrb[0].mxu0
      %v1655 = vadd.f32 %v1511, %v1654
      %v1656 = vpop.f32.mrb[0].mxu0
      %1657 = vmatprep.mubr.bf16.mxu0 0
      %1658 = vmatmul.mubr.bf16.gmra.mrb[0].mxu0 %v1482
      %v1659 = vpop.f32.mrb[0].mxu0
      %v1660 = vadd.f32 %v1511, %v1659
      %v1661 = vpop.f32.mrb[0].mxu0
      %v1662 = vpop.f32.mrb[0].mxu0
      %v1663 = vadd.f32 %v1511, %v1662
      %v1664 = vpop.f32.mrb[0].mxu0
      %1665 = vmatprep.mubr.bf16.mxu0 0
      %1666 = vmatmul.mubr.bf16.gmra.mrb[0].mxu0 %v1483
      %v1667 = vpop.f32.mrb[0].mxu0
      %v1668 = vadd.f32 %v1511, %v1667
      %v1669 = vpop.f32.mrb[0].mxu0
      %v1670 = vpop.f32.mrb[0].mxu0
      %v1671 = vadd.f32 %v1511, %v1670
      %v1672 = vpop.f32.mrb[0].mxu0
      %1673 = vmatprep.mubr.bf16.mxu0 0
      %1674 = vmatmul.mubr.bf16.gmra.mrb[0].mxu0 %v1484
      %v1675 = vpop.f32.mrb[0].mxu0
      %v1676 = vadd.f32 %v1511, %v1675
      %v1677 = vpop.f32.mrb[0].mxu0
      %v1678 = vpop.f32.mrb[0].mxu0
      %v1679 = vadd.f32 %v1511, %v1678
      %v1680 = vpop.f32.mrb[0].mxu0
      %1681 = vmatprep.mubr.bf16.mxu0 0
      %1682 = vmatmul.mubr.bf16.gmra.mrb[0].mxu0 %v1485
      %v1683 = vpop.f32.mrb[0].mxu0
      %v1684 = vadd.f32 %v1511, %v1683
      %v1685 = vpop.f32.mrb[0].mxu0
      %v1686 = vpop.f32.mrb[0].mxu0
      %v1687 = vadd.f32 %v1511, %v1686
      %v1688 = vpop.f32.mrb[0].mxu0
      %1689 = vmatprep.mubr.bf16.mxu0 0
      %1690 = vmatmul.mubr.bf16.gmra.mrb[0].mxu0 %v1486
      %v1691 = vpop.f32.mrb[0].mxu0
      %v1692 = vadd.f32 %v1511, %v1691
      %v1693 = vpop.f32.mrb[0].mxu0
      %v1694 = vpop.f32.mrb[0].mxu0
      %v1695 = vadd.f32 %v1511, %v1694
      %v1696 = vpop.f32.mrb[0].mxu0
      %1697 = vmatprep.mubr.bf16.mxu0 0
      %1698 = vmatmul.mubr.bf16.gmra.mrb[0].mxu0 %v1487
      %v1699 = vpop.f32.mrb[0].mxu0
      %v1700 = vadd.f32 %v1511, %v1699
      %v1701 = vpop.f32.mrb[0].mxu0
      %v1702 = vpop.f32.mrb[0].mxu0
      %v1703 = vadd.f32 %v1511, %v1702
      %v1704 = vpop.f32.mrb[0].mxu0
      %1705 = vmatprep.mubr.bf16.mxu0 0
      %1706 = vmatmul.mubr.bf16.gmra.mrb[0].mxu0 %v1488
      %v1707 = vpop.f32.mrb[0].mxu0
      %v1708 = vadd.f32 %v1511, %v1707
      %v1709 = vpop.f32.mrb[0].mxu0
      %v1710 = vpop.f32.mrb[0].mxu0
      %v1711 = vadd.f32 %v1511, %v1710
      %v1712 = vpop.f32.mrb[0].mxu0
      %1713 = vmatprep.mubr.bf16.mxu0 0
      %1714 = vmatmul.mubr.bf16.gmra.mrb[0].mxu0 %v1489
      %v1715 = vpop.f32.mrb[0].mxu0
      %v1716 = vadd.f32 %v1511, %v1715
      %v1717 = vpop.f32.mrb[0].mxu0
      %v1718 = vpop.f32.mrb[0].mxu0
      %v1719 = vadd.f32 %v1511, %v1718
      %v1720 = vpop.f32.mrb[0].mxu0
      %1721 = vdwg.mxu0
      %v1722 = vsub.f32 0.0, %v1596
      %v1723 = vsub.f32 0.0, %v1599
      %v1724 = vsub.f32 0.0, %v1604
      %v1725 = vsub.f32 0.0, %v1607
      %v1726 = vsub.f32 0.0, %v1612
      %v1727 = vsub.f32 0.0, %v1615
      %v1728 = vsub.f32 0.0, %v1620
      %v1729 = vsub.f32 0.0, %v1623
      %v1730 = vsub.f32 0.0, %v1628
      %v1731 = vsub.f32 0.0, %v1631
      %v1732 = vsub.f32 0.0, %v1636
      %v1733 = vsub.f32 0.0, %v1639
      %v1734 = vsub.f32 0.0, %v1644
      %v1735 = vsub.f32 0.0, %v1647
      %v1736 = vsub.f32 0.0, %v1652
      %v1737 = vsub.f32 0.0, %v1655
      %v1738 = vsub.f32 0.0, %v1660
      %v1739 = vsub.f32 0.0, %v1663
      %v1740 = vsub.f32 0.0, %v1668
      %v1741 = vsub.f32 0.0, %v1671
      %v1742 = vsub.f32 0.0, %v1676
      %v1743 = vsub.f32 0.0, %v1679
      %v1744 = vsub.f32 0.0, %v1684
      %v1745 = vsub.f32 0.0, %v1687
      %v1746 = vsub.f32 0.0, %v1692
      %v1747 = vsub.f32 0.0, %v1695
      %v1748 = vsub.f32 0.0, %v1700
      %v1749 = vsub.f32 0.0, %v1703
      %v1750 = vsub.f32 0.0, %v1708
      %v1751 = vsub.f32 0.0, %v1711
      %v1752 = vsub.f32 0.0, %v1716
      %v1753 = vsub.f32 0.0, %v1719
      %v1754 = vmul.f32 %v1722, 1.442695
      %v1755 = vpow.pop %v1754
      %v1756 = vmul.f32 %v1723, 1.442695
      %v1757 = vpow.pop %v1756
      %v1758 = vmul.f32 %v1724, 1.442695
      %v1759 = vpow.pop %v1758
      %v1760 = vmul.f32 %v1725, 1.442695
      %v1761 = vpow.pop %v1760
      %v1762 = vmul.f32 %v1726, 1.442695
      %v1763 = vpow.pop %v1762
      %v1764 = vmul.f32 %v1727, 1.442695
      %v1765 = vpow.pop %v1764
      %v1766 = vmul.f32 %v1728, 1.442695
      %v1767 = vpow.pop %v1766
      %v1768 = vmul.f32 %v1729, 1.442695
      %v1769 = vpow.pop %v1768
      %v1770 = vmul.f32 %v1730, 1.442695
      %v1771 = vpow.pop %v1770
      %v1772 = vmul.f32 %v1731, 1.442695
      %v1773 = vpow.pop %v1772
      %v1774 = vmul.f32 %v1732, 1.442695
      %v1775 = vpow.pop %v1774
      %v1776 = vmul.f32 %v1733, 1.442695
      %v1777 = vpow.pop %v1776
      %v1778 = vmul.f32 %v1734, 1.442695
      %v1779 = vpow.pop %v1778
      %v1780 = vmul.f32 %v1735, 1.442695
      %v1781 = vpow.pop %v1780
      %v1782 = vmul.f32 %v1736, 1.442695
      %v1783 = vpow.pop %v1782
      %v1784 = vmul.f32 %v1737, 1.442695
      %v1785 = vpow.pop %v1784
      %v1786 = vmul.f32 %v1738, 1.442695
      %v1787 = vpow.pop %v1786
      %v1788 = vmul.f32 %v1739, 1.442695
      %v1789 = vpow.pop %v1788
      %v1790 = vmul.f32 %v1740, 1.442695
      %v1791 = vpow.pop %v1790
      %v1792 = vmul.f32 %v1741, 1.442695
      %v1793 = vpow.pop %v1792
      %v1794 = vmul.f32 %v1742, 1.442695
      %v1795 = vpow.pop %v1794
      %v1796 = vmul.f32 %v1743, 1.442695
      %v1797 = vpow.pop %v1796
      %v1798 = vmul.f32 %v1744, 1.442695
      %v1799 = vpow.pop %v1798
      %v1800 = vmul.f32 %v1745, 1.442695
      %v1801 = vpow.pop %v1800
      %v1802 = vmul.f32 %v1746, 1.442695
      %v1803 = vpow.pop %v1802
      %v1804 = vmul.f32 %v1747, 1.442695
      %v1805 = vpow.pop %v1804
      %v1806 = vmul.f32 %v1748, 1.442695
      %v1807 = vpow.pop %v1806
      %v1808 = vmul.f32 %v1749, 1.442695
      %v1809 = vpow.pop %v1808
      %v1810 = vmul.f32 %v1750, 1.442695
      %v1811 = vpow.pop %v1810
      %v1812 = vmul.f32 %v1751, 1.442695
      %v1813 = vpow.pop %v1812
      %v1814 = vmul.f32 %v1752, 1.442695
      %v1815 = vpow.pop %v1814
      %v1816 = vmul.f32 %v1753, 1.442695
      %v1817 = vpow.pop %v1816
      %v1818 = vadd.f32 %v1755, 1.0
      %v1819 = vadd.f32 %v1757, 1.0
      %v1820 = vadd.f32 %v1759, 1.0
      %v1821 = vadd.f32 %v1761, 1.0
      %v1822 = vadd.f32 %v1763, 1.0
      %v1823 = vadd.f32 %v1765, 1.0
      %v1824 = vadd.f32 %v1767, 1.0
      %v1825 = vadd.f32 %v1769, 1.0
      %v1826 = vadd.f32 %v1771, 1.0
      %v1827 = vadd.f32 %v1773, 1.0
      %v1828 = vadd.f32 %v1775, 1.0
      %v1829 = vadd.f32 %v1777, 1.0
      %v1830 = vadd.f32 %v1779, 1.0
      %v1831 = vadd.f32 %v1781, 1.0
      %v1832 = vadd.f32 %v1783, 1.0
      %v1833 = vadd.f32 %v1785, 1.0
      %v1834 = vadd.f32 %v1787, 1.0
      %v1835 = vadd.f32 %v1789, 1.0
      %v1836 = vadd.f32 %v1791, 1.0
      %v1837 = vadd.f32 %v1793, 1.0
      %v1838 = vadd.f32 %v1795, 1.0
      %v1839 = vadd.f32 %v1797, 1.0
      %v1840 = vadd.f32 %v1799, 1.0
      %v1841 = vadd.f32 %v1801, 1.0
      %v1842 = vadd.f32 %v1803, 1.0
      %v1843 = vadd.f32 %v1805, 1.0
      %v1844 = vadd.f32 %v1807, 1.0
      %v1845 = vadd.f32 %v1809, 1.0
      %v1846 = vadd.f32 %v1811, 1.0
      %v1847 = vadd.f32 %v1813, 1.0
      %v1848 = vadd.f32 %v1815, 1.0
      %v1849 = vadd.f32 %v1817, 1.0
      %v1850 = vrcp.pop %v1818
      %v1851 = vrcp.pop %v1819
      %v1852 = vrcp.pop %v1820
      %v1853 = vrcp.pop %v1821
      %v1854 = vrcp.pop %v1822
      %v1855 = vrcp.pop %v1823
      %v1856 = vrcp.pop %v1824
      %v1857 = vrcp.pop %v1825
      %v1858 = vrcp.pop %v1826
      %v1859 = vrcp.pop %v1827
      %v1860 = vrcp.pop %v1828
      %v1861 = vrcp.pop %v1829
      %v1862 = vrcp.pop %v1830
      %v1863 = vrcp.pop %v1831
      %v1864 = vrcp.pop %v1832
      %v1865 = vrcp.pop %v1833
      %v1866 = vrcp.pop %v1834
      %v1867 = vrcp.pop %v1835
      %v1868 = vrcp.pop %v1836
      %v1869 = vrcp.pop %v1837
      %v1870 = vrcp.pop %v1838
      %v1871 = vrcp.pop %v1839
      %v1872 = vrcp.pop %v1840
      %v1873 = vrcp.pop %v1841
      %v1874 = vrcp.pop %v1842
      %v1875 = vrcp.pop %v1843
      %v1876 = vrcp.pop %v1844
      %v1877 = vrcp.pop %v1845
      %v1878 = vrcp.pop %v1846
      %v1879 = vrcp.pop %v1847
      %v1880 = vrcp.pop %v1848
      %v1881 = vrcp.pop %v1849
      %v1882 = vlaneseq
      %v1883 = vand.u32 %v1882, 127
      %vm1884 = vcmp.eq.s32.totalorder %v1883, 10
      %v1885 = vsel %vm1884, %v1850, %v1284
      %v1886 = vsel %vm1884, %v1851, %v1288
      %v1887 = vsel %vm1884, %v1852, %v1294
      %v1888 = vsel %vm1884, %v1853, %v1298
      %v1889 = vsel %vm1884, %v1854, %v1304
      %v1890 = vsel %vm1884, %v1855, %v1308
      %v1891 = vsel %vm1884, %v1856, %v1314
      %v1892 = vsel %vm1884, %v1857, %v1318
      %v1893 = vsel %vm1884, %v1858, %v1324
      %v1894 = vsel %vm1884, %v1859, %v1328
      %v1895 = vsel %vm1884, %v1860, %v1334
      %v1896 = vsel %vm1884, %v1861, %v1338
      %v1897 = vsel %vm1884, %v1862, %v1344
      %v1898 = vsel %vm1884, %v1863, %v1348
      %v1899 = vsel %vm1884, %v1864, %v1354
      %v1900 = vsel %vm1884, %v1865, %v1358
      %v1901 = vsel %vm1884, %v1866, %v1364
      %v1902 = vsel %vm1884, %v1867, %v1368
      %v1903 = vsel %vm1884, %v1868, %v1374
      %v1904 = vsel %vm1884, %v1869, %v1378
      %v1905 = vsel %vm1884, %v1870, %v1384
      %v1906 = vsel %vm1884, %v1871, %v1388
      %v1907 = vsel %vm1884, %v1872, %v1394
      %v1908 = vsel %vm1884, %v1873, %v1398
      %v1909 = vsel %vm1884, %v1874, %v1404
      %v1910 = vsel %vm1884, %v1875, %v1408
      %v1911 = vsel %vm1884, %v1876, %v1414
      %v1912 = vsel %vm1884, %v1877, %v1418
      %v1913 = vsel %vm1884, %v1878, %v1424
      %v1914 = vsel %vm1884, %v1879, %v1428
      %v1915 = vsel %vm1884, %v1880, %v1434
      %v1916 = vsel %vm1884, %v1881, %v1438
      %1917 = vst [vmem:[%s388] sm:$0xff] %v1885
      %1918 = vst [vmem:[%s388 + $0x8] sm:$0xff] %v1886
      %1919 = vst [vmem:[%s388 + $0x10] sm:$0xff] %v1887
      %1920 = vst [vmem:[%s388 + $0x18] sm:$0xff] %v1888
      %1921 = vst [vmem:[%s388 + $0x20] sm:$0xff] %v1889
      %1922 = vst [vmem:[%s388 + $0x28] sm:$0xff] %v1890
      %1923 = vst [vmem:[%s388 + $0x30] sm:$0xff] %v1891
      %1924 = vst [vmem:[%s388 + $0x38] sm:$0xff] %v1892
      %1925 = vst [vmem:[%s388 + $0x40] sm:$0xff] %v1893
      %1926 = vst [vmem:[%s388 + $0x48] sm:$0xff] %v1894
      %1927 = vst [vmem:[%s388 + $0x50] sm:$0xff] %v1895
      %1928 = vst [vmem:[%s388 + $0x58] sm:$0xff] %v1896
      %1929 = vst [vmem:[%s388 + $0x60] sm:$0xff] %v1897
      %1930 = vst [vmem:[%s388 + $0x68] sm:$0xff] %v1898
      %1931 = vst [vmem:[%s388 + $0x70] sm:$0xff] %v1899
      %1932 = vst [vmem:[%s388 + $0x78] sm:$0xff] %v1900
      %1933 = vst [vmem:[%s388 + $0x80] sm:$0xff] %v1901
      %1934 = vst [vmem:[%s388 + $0x88] sm:$0xff] %v1902
      %1935 = vst [vmem:[%s388 + $0x90] sm:$0xff] %v1903
      %1936 = vst [vmem:[%s388 + $0x98] sm:$0xff] %v1904
      %1937 = vst [vmem:[%s388 + $0xa0] sm:$0xff] %v1905
      %1938 = vst [vmem:[%s388 + $0xa8] sm:$0xff] %v1906
      %1939 = vst [vmem:[%s388 + $0xb0] sm:$0xff] %v1907
      %1940 = vst [vmem:[%s388 + $0xb8] sm:$0xff] %v1908
      %1941 = vst [vmem:[%s388 + $0xc0] sm:$0xff] %v1909
      %1942 = vst [vmem:[%s388 + $0xc8] sm:$0xff] %v1910
      %1943 = vst [vmem:[%s388 + $0xd0] sm:$0xff] %v1911
      %1944 = vst [vmem:[%s388 + $0xd8] sm:$0xff] %v1912
      %1945 = vst [vmem:[%s388 + $0xe0] sm:$0xff] %v1913
      %1946 = vst [vmem:[%s388 + $0xe8] sm:$0xff] %v1914
      %1947 = vst [vmem:[%s388 + $0xf0] sm:$0xff] %v1915
      %1948 = vst [vmem:[%s388 + $0xf8] sm:$0xff] %v1916
      %s1949 = smul.u32 32, %s22
      %p1950 = scmp.lt.s32.totalorder %s1949, 63
      %s1951 = scalar_select %p1950, %s1949, 63
      %s1952 = smul.addr %s1951, 8
      %s1953 = scalar_lea.vmem %s11, %s1952
      // Predicated region
      $region65: #{mlp_learn_forward.1} parent=63 // pred_check
        %p1954 = pneg %p276
      $region66: #{mlp_learn_forward.1} parent=63 // pred_check_branch
        %1956 = sbr.rel (%p1954) target = $region68
      $region67: #{mlp_learn_forward.1} parent=63 // pred_region
        %s1957 = smul.u32 32, %s22
      $region68: #{mlp_learn_forward.1} parent=63 // pred_fallthru
        _
    $region64: #{mlp_learn_forward.1} parent=5 // pred_fallthru
      _
    %p1958 = scmp.le.s32.totalorder 2, %s17
    // Predicated region
    $region69: #{mlp_learn_forward.1} parent=5 // pred_check
      %p1959 = pneg %p1958
    $region70: #{mlp_learn_forward.1} parent=5 // pred_check_branch
      %1961 = sbr.rel (%p1959) target = $region72
    $region71: #{mlp_learn_forward.1} parent=5 // pred_region
      %s1962 = ssub.s32 %s17, 2
      // Predicated region
      $region73: #{mlp_learn_forward.1} parent=71 // pred_check
        %p1963 = pneg %p282
      $region74: #{mlp_learn_forward.1} parent=71 // pred_check_branch
        %1965 = sbr.rel (%p1963) target = $region76
      $region75: #{mlp_learn_forward.1} parent=71 // pred_region
        %s1966 = smul.u32 32, %s23
        %p1967 = scmp.lt.s32.totalorder %s1966, 63
        %s1968 = scalar_select %p1967, %s1966, 63
        %s1969 = smul.addr %s1968, 8
        %s1970 = scalar_lea.vmem %s11, %s1969
      $region76: #{mlp_learn_forward.1} parent=71 // pred_fallthru
        _
    $region72: #{mlp_learn_forward.1} parent=5 // pred_fallthru
      _
  $region6: #{mlp_learn_forward.1} parent=0 // loop_footer
    %s21 = sadd.s32 1, %s17
  $region7: #{mlp_learn_forward.1} parent=0 // loop_footer_branch
    %16 = sbr.rel target = $region3
  $region8: #{mlp_learn_forward.1} parent=0 // loop_exit
    _

</llo_original>
